<compile_context>
chip_gen: v6e
topology: v6e:2x2x1
jax: 0.10.0
libtpu: 0.0.40
codegen_flags: <defaults>
</compile_context>

<pallas_src>
import functools

import jax
import jax.numpy as jnp
import numpy as np
from jax.experimental import pallas as pl
from jax.experimental.pallas import tpu as pltpu


# ----------------------------------------------------------------------------
# Kernel 1: fused conv stack (all depth layers in one kernel, per batch element)
# ----------------------------------------------------------------------------
def _conv_stack_kernel(x_ref, w_ref, b_ref, gamma_ref, beta_ref, mask_ref,
                       out_ref, buf0, buf1, *, depth, ksize, pad):
    """Fused [weight-norm Conv1d -> LayerNorm -> LeakyReLU(0.2) -> mask] x depth.

    x_ref     : (T, C)          bf16 embedded tokens for this batch element
    w_ref     : (depth*K, C, C) bf16 per-layer, per-tap conv weights (Cin, Cout)
    b_ref     : (depth, 1, C)   f32 conv biases
    gamma_ref : (depth, 1, C)   f32 LayerNorm gammas
    beta_ref  : (depth, 1, C)   f32 LayerNorm betas
    mask_ref  : (T, 1)          f32 1.0 = valid frame, 0.0 = padded
    out_ref   : (T, C)          bf16 final conv-stack activations
    buf0/buf1 : (T+2*pad, C)    bf16 VMEM ping-pong buffers (halos stay zero)
    """
    T, C = out_ref.shape

    # Zero once -> halo rows stay zero for every layer (only the middle is rewritten).
    buf0[...] = jnp.zeros_like(buf0)
    buf1[...] = jnp.zeros_like(buf1)

    m = mask_ref[...]                                                   # (T, 1)
    buf0[pad:pad + T, :] = (x_ref[...].astype(jnp.float32) * m).astype(buf0.dtype)

    src, dst = buf0, buf1
    for d in range(depth):                       # static depth -> unrolled
        # Conv1d as K shifted MXU matmuls, f32 accumulation.
        # TODO(synk): taps j=1..K-1 are sublane-unaligned slices; switch to im2col or
        #             pltpu.roll pre-shift if the bundle shows vld/XLU binding at prod C.
        acc = jnp.zeros((T, C), jnp.float32)
        for j in range(ksize):
            acc = acc + jnp.dot(src[j:j + T, :], w_ref[d * ksize + j],
                                preferred_element_type=jnp.float32)
        y = acc + b_ref[d]

        # LayerNorm over channels, one-pass statistics (E[y^2] - mean^2).
        mean = jnp.mean(y, axis=-1, keepdims=True)
        var = jnp.mean(y * y, axis=-1, keepdims=True) - mean * mean
        y = (y - mean) * jax.lax.rsqrt(var + 1e-5)
        y = y * gamma_ref[d] + beta_ref[d]

        # LeakyReLU(0.2); Dropout is identity in eval mode; re-apply frame mask.
        y = jnp.where(y >= 0.0, y, 0.2 * y)
        y = y * m

        if d == depth - 1:
            out_ref[...] = y.astype(out_ref.dtype)
        else:
            dst[pad:pad + T, :] = y.astype(dst.dtype)
            src, dst = dst, src


def conv_stack_pallas(x_bf16, conv_p, mask3, *, depth, ksize):
    """x_bf16: (B, T, C) bf16, mask3: (B, T, 1) f32 -> (B, T, C) bf16."""
    B, T, C = x_bf16.shape
    pad = (ksize - 1) // 2
    Tp = T + 2 * pad
    kernel = functools.partial(_conv_stack_kernel, depth=depth, ksize=ksize, pad=pad)
    return pl.pallas_call(
        kernel,
        out_shape=jax.ShapeDtypeStruct((B, T, C), jnp.bfloat16),
        grid=(B,),
        in_specs=[pl.BlockSpec((None, T, C), lambda b: (b, 0, 0)),
                  pl.BlockSpec((depth * ksize, C, C), lambda b: (0, 0, 0)),
                  pl.BlockSpec((depth, 1, C), lambda b: (0, 0, 0)),
                  pl.BlockSpec((depth, 1, C), lambda b: (0, 0, 0)),
                  pl.BlockSpec((depth, 1, C), lambda b: (0, 0, 0)),
                  pl.BlockSpec((None, T, 1), lambda b: (b, 0, 0))],
        out_specs=pl.BlockSpec((None, T, C), lambda b: (b, 0, 0)),
        scratch_shapes=[pltpu.VMEM((Tp, C), jnp.bfloat16),
                        pltpu.VMEM((Tp, C), jnp.bfloat16)],
        compiler_params=pltpu.CompilerParams(
            dimension_semantics=("parallel",),
            vmem_limit_bytes=32 * 1024 * 1024),
    )(x_bf16, conv_p["w"], conv_p["b"], conv_p["gamma"], conv_p["beta"], mask3)


# ----------------------------------------------------------------------------
# Kernel 2: bidirectional single-layer LSTM (fused fwd/bwd recurrence)
# ----------------------------------------------------------------------------
def _bilstm_kernel(x_ref, wih_ref, whh_ref, b_ref, out_ref,
                   g_ref, hf_ref, hb_ref, *, hidden):
    """One batch element per grid step.

    Gate column order (8H): [i_f, i_b, f_f, f_b, o_f, o_b, g_f, g_b].

    x_ref   : (T, C)    bf16 conv-stack output
    wih_ref : (C, 8H)   bf16 both directions' input weights (reordered columns)
    whh_ref : (2H, 8H)  bf16 block_diag(Whh_f, Whh_b) (reordered columns)
    b_ref   : (1, 8H)   f32  combined b_ih + b_hh, both directions
    out_ref : (T, 2H)   f32  fwd hidden in [:, :H], bwd hidden in [:, H:]
    g_ref   : (T, 8H)   f32  scratch: hoisted input projection
    hf_ref  : (T, H)    f32  scratch: forward hidden states
    hb_ref  : (T, H)    f32  scratch: backward hidden states
    """
    T, _ = x_ref.shape
    H = hidden

    # Hoisted input projection for both directions: one bulk MXU matmul (+ bias).
    g_ref[...] = (jnp.dot(x_ref[...], wih_ref[...],
                          preferred_element_type=jnp.float32) + b_ref[...])

    # Forward-direction columns are the even H-sized blocks.
    col = jax.lax.broadcasted_iota(jnp.int32, (1, 8 * H), 1)
    is_fwd = ((col // H) % 2) == 0

    def body(t, carry):
        h, c = carry                                  # (1, 2H) f32: [fwd | bwd]
        tb = T - 1 - t
        # fwd gates read time t, bwd gates read time T-1-t.
        gi = jnp.where(is_fwd, g_ref[pl.ds(t, 1), :], g_ref[pl.ds(tb, 1), :])
        z = gi + jnp.dot(h.astype(jnp.bfloat16), whh_ref[...],
                         preferred_element_type=jnp.float32)
        ifo = jax.nn.sigmoid(z[:, :6 * H])            # one sigmoid over i|f|o (both dirs)
        gg = jnp.tanh(z[:, 6 * H:])                   # one tanh over g (both dirs)
        c = ifo[:, 2 * H:4 * H] * c + ifo[:, :2 * H] * gg
        h = ifo[:, 4 * H:6 * H] * jnp.tanh(c)
        hf_ref[pl.ds(t, 1), :] = h[:, :H]             # VMEM scratch, not HBM output
        hb_ref[pl.ds(tb, 1), :] = h[:, H:]
        return h, c

    zeros = jnp.zeros((1, 2 * H), jnp.float32)
    jax.lax.fori_loop(0, T, body, (zeros, zeros))

    # Two bulk, lane-dense stores of the output (no per-step masked stores).
    out_ref[:, :H] = hf_ref[...].astype(out_ref.dtype)
    out_ref[:, H:] = hb_ref[...].astype(out_ref.dtype)


def bilstm_pallas(x_btc, lstm_p):
    """x_btc: (B, T, C) -> (B, T, 2H) with H = C // 2. No transposes."""
    B, T, C = x_btc.shape
    H = lstm_p["hidden"]
    x_btc = x_btc.astype(jnp.bfloat16)
    kernel = functools.partial(_bilstm_kernel, hidden=H)
    return pl.pallas_call(
        kernel,
        out_shape=jax.ShapeDtypeStruct((B, T, 2 * H), jnp.float32),
        grid=(B,),
        in_specs=[pl.BlockSpec((None, T, C), lambda b: (b, 0, 0)),
                  pl.BlockSpec((C, 8 * H), lambda b: (0, 0)),
                  pl.BlockSpec((2 * H, 8 * H), lambda b: (0, 0)),
                  pl.BlockSpec((1, 8 * H), lambda b: (0, 0))],
        out_specs=pl.BlockSpec((None, T, 2 * H), lambda b: (b, 0, 0)),
        scratch_shapes=[pltpu.VMEM((T, 8 * H), jnp.float32),
                        pltpu.VMEM((T, H), jnp.float32),
                        pltpu.VMEM((T, H), jnp.float32)],
        compiler_params=pltpu.CompilerParams(
            dimension_semantics=("parallel",),
            vmem_limit_bytes=32 * 1024 * 1024),
    )(x_btc, lstm_p["wih"], lstm_p["whh"], lstm_p["b"])


# ----------------------------------------------------------------------------
# Parameters (PyTorch shapes) and one-time kernel prep
# ----------------------------------------------------------------------------
def _weight_norm_conv(v, g):
    """weight_norm(dim=0): W = g * v / ||v||, norm over (Cin, K) per out channel."""
    norm = jnp.sqrt(jnp.sum(v * v, axis=(1, 2), keepdims=True))
    return g * v / norm


def init_params(key, n_symbols, channels, kernel_size, depth):
    H = channels // 2
    ks = jax.random.split(key, 4 + depth)

    def w(k, shape, scale=0.1):
        return scale * jax.random.normal(k, shape, jnp.float32)

    raw = {"embedding": w(ks[0], (n_symbols, channels)), "cnn": [], "lstm": {}}
    for d in range(depth):
        kk = jax.random.split(ks[1 + d], 5)
        raw["cnn"].append({
            "v": w(kk[0], (channels, channels, kernel_size)),          # (Cout,Cin,K)
            "g": 1.0 + w(kk[1], (channels, 1, 1)),
            "conv_b": w(kk[2], (channels,)),
            "gamma": 1.0 + w(kk[3], (channels,)),
            "beta": w(kk[4], (channels,)),
        })
    kl = jax.random.split(ks[1 + depth], 8)
    raw["lstm"] = {
        "wih_f": w(kl[0], (4 * H, channels)), "whh_f": w(kl[1], (4 * H, H)),
        "bih_f": w(kl[2], (4 * H,)),          "bhh_f": w(kl[3], (4 * H,)),
        "wih_b": w(kl[4], (4 * H, channels)), "whh_b": w(kl[5], (4 * H, H)),
        "bih_b": w(kl[6], (4 * H,)),          "bhh_b": w(kl[7], (4 * H,)),
    }
    return raw


def prepare_params(raw, kernel_size):
    """One-time prep: weight_norm resolution, transposes, gate reorder, block-diag,
    bias fusion, bf16 casts."""
    depth = len(raw["cnn"])
    C = raw["embedding"].shape[1]
    H = C // 2

    # ---- conv stack: (depth*K, Cin, Cout) weight slab + per-layer row params
    w_list, b_list, g_list, be_list = [], [], [], []
    for layer in raw["cnn"]:
        W = _weight_norm_conv(layer["v"], layer["g"])                   # (Cout,Cin,K)
        w_list.append(jnp.transpose(W, (2, 1, 0)))                      # (K,Cin,Cout)
        b_list.append(layer["conv_b"].reshape(1, -1))
        g_list.append(layer["gamma"].reshape(1, -1))
        be_list.append(layer["beta"].reshape(1, -1))
    conv_p = {
        "w": jnp.stack(w_list, 0).reshape(depth * kernel_size, C, C).astype(jnp.bfloat16),
        "b": jnp.stack(b_list, 0),                                      # (depth,1,C)
        "gamma": jnp.stack(g_list, 0),
        "beta": jnp.stack(be_list, 0),
    }

    # ---- BiLSTM: reorder torch gate rows [i,f,g,o] into columns
    #      [i_f,i_b, f_f,f_b, o_f,o_b, g_f,g_b] and block-diagonalize Whh.
    lp = raw["lstm"]

    def gate_cols(w):            # w: (4H, N) torch layout -> (N, H) blocks i, f, g, o
        return jnp.split(jnp.transpose(w), 4, axis=-1)

    i_f, f_f, g_f, o_f = gate_cols(lp["wih_f"])
    i_b, f_b, g_b, o_b = gate_cols(lp["wih_b"])
    wih_big = jnp.concatenate([i_f, i_b, f_f, f_b, o_f, o_b, g_f, g_b], axis=-1)  # (C,8H)

    ih_f, fh_f, gh_f, oh_f = gate_cols(lp["whh_f"])                     # each (H, H)
    ih_b, fh_b, gh_b, oh_b = gate_cols(lp["whh_b"])
    Z = jnp.zeros((H, H), jnp.float32)
    top = jnp.concatenate([ih_f, Z, fh_f, Z, oh_f, Z, gh_f, Z], axis=-1)  # fwd rows
    bot = jnp.concatenate([Z, ih_b, Z, fh_b, Z, oh_b, Z, gh_b], axis=-1)  # bwd rows
    whh_big = jnp.concatenate([top, bot], axis=0)                         # (2H, 8H)

    bi_f, bf_f, bg_f, bo_f = jnp.split(lp["bih_f"] + lp["bhh_f"], 4)
    bi_b, bf_b, bg_b, bo_b = jnp.split(lp["bih_b"] + lp["bhh_b"], 4)
    b_big = jnp.concatenate([bi_f, bi_b, bf_f, bf_b,
                             bo_f, bo_b, bg_f, bg_b]).reshape(1, -1)       # (1, 8H)

    return {
        "embedding": raw["embedding"],
        "depth": depth,
        "ksize": kernel_size,
        "conv": conv_p,
        "lstm": {"wih": wih_big.astype(jnp.bfloat16),
                 "whh": whh_big.astype(jnp.bfloat16),
                 "b": b_big,
                 "hidden": H},
    }


def text_encoder_pallas(tokens, input_lengths, frame_mask, prep):
    """tokens: (B,T) int32, frame_mask: (B,T) float (1=valid) -> (B, T, channels)."""
    del input_lengths  # the module's forward never uses it (no pack_padded_sequence)
    mask3 = frame_mask.astype(jnp.float32)[..., None]                   # (B, T, 1)
    # TODO(synk): embedding gather left as jnp.take glue (data-dependent gather).
    h = jnp.take(prep["embedding"], tokens, axis=0).astype(jnp.bfloat16)
    h = conv_stack_pallas(h, prep["conv"], mask3,
                          depth=prep["depth"], ksize=prep["ksize"])      # bf16 (B,T,C)
    return bilstm_pallas(h, prep["lstm"])                                # f32 (B,T,C)


# ---------------------- pure-JAX reference (for checking) -------------------
def _lstm_dir_ref(x, wih, whh, bih, bhh, reverse):
    B, T, _ = x.shape
    H = whh.shape[1]
    xs = jnp.transpose(x, (1, 0, 2))
    if reverse:
        xs = xs[::-1]

    def step(carry, x_t):
        h, c = carry
        gates = x_t @ wih.T + bih + h @ whh.T + bhh
        i, f, g, o = jnp.split(gates, 4, axis=-1)
        i, f, o = jax.nn.sigmoid(i), jax.nn.sigmoid(f), jax.nn.sigmoid(o)
        g = jnp.tanh(g)
        c = f * c + i * g
        h = o * jnp.tanh(c)
        return (h, c), h

    init = (jnp.zeros((B, H), jnp.float32), jnp.zeros((B, H), jnp.float32))
    _, hs = jax.lax.scan(step, init, xs)
    if reverse:
        hs = hs[::-1]
    return jnp.transpose(hs, (1, 0, 2))


def text_encoder_ref(tokens, input_lengths, frame_mask, raw, kernel_size):
    del input_lengths
    B, T = tokens.shape
    pad = (kernel_size - 1) // 2
    mask3 = frame_mask.astype(jnp.float32)[..., None]
    h = raw["embedding"][tokens] * mask3
    for layer in raw["cnn"]:
        W = _weight_norm_conv(layer["v"], layer["g"])          # (Cout, Cin, K)
        hp = jnp.pad(h, ((0, 0), (pad, pad), (0, 0)))
        y = layer["conv_b"][None, None, :]
        for k in range(kernel_size):
            y = y + jnp.einsum("bti,oi->bto", hp[:, k:k + T, :], W[:, :, k])
        mean = jnp.mean(y, axis=-1, keepdims=True)
        var = jnp.mean((y - mean) ** 2, axis=-1, keepdims=True)
        y = (y - mean) / jnp.sqrt(var + 1e-5)
        y = y * layer["gamma"] + layer["beta"]
        y = jnp.where(y >= 0.0, y, 0.2 * y)                    # LeakyReLU(0.2)
        h = y * mask3                                          # Dropout = identity (eval)
    lp = raw["lstm"]
    hf = _lstm_dir_ref(h, lp["wih_f"], lp["whh_f"], lp["bih_f"], lp["bhh_f"], False)
    hb = _lstm_dir_ref(h, lp["wih_b"], lp["whh_b"], lp["bih_b"], lp["bhh_b"], True)
    return jnp.concatenate([hf, hb], axis=-1)


# ----------------------------------------------------------------------------
if __name__ == "__main__":
    B, T, channels, kernel_size, depth, n_symbols = 2, 16, 64, 5, 3, 50

    key = jax.random.PRNGKey(0)
    kt, kp = jax.random.split(key, 2)
    tokens = jax.random.randint(kt, (B, T), 0, n_symbols, dtype=jnp.int32)
    input_lengths = jnp.array([T, T - 4], dtype=jnp.int32)
    frame_mask = (jnp.arange(T)[None, :] < input_lengths[:, None]).astype(jnp.float32)

    raw = init_params(kp, n_symbols, channels, kernel_size, depth)
    prep = prepare_params(raw, kernel_size)

    out = text_encoder_pallas(tokens, input_lengths, frame_mask, prep)
    out = jax.block_until_ready(out)

    ref = text_encoder_ref(tokens, input_lengths, frame_mask, raw, kernel_size)

    assert out.shape == (B, T, channels), out.shape
    np.testing.assert_allclose(np.asarray(out), np.asarray(ref),
                               rtol=3e-2, atol=3e-2)
    print("KERNEL_OK")
</pallas_src>

<mosaic_0001>
module attributes {stable_mosaic.version = 11 : i64} {
  func.func @_conv_stack_kernel(%arg0: i32, %arg1: memref<1x16x64xbf16, #tpu.memory_space<vmem>>, %arg2: memref<15x64x64xbf16, #tpu.memory_space<vmem>>, %arg3: memref<3x1x64xf32, #tpu.memory_space<vmem>>, %arg4: memref<3x1x64xf32, #tpu.memory_space<vmem>>, %arg5: memref<3x1x64xf32, #tpu.memory_space<vmem>>, %arg6: memref<1x16x1xf32, #tpu.memory_space<vmem>>, %arg7: memref<1x16x64xbf16, #tpu.memory_space<vmem>>, %arg8: memref<20x64xbf16, #tpu.memory_space<vmem>>, %arg9: memref<20x64xbf16, #tpu.memory_space<vmem>>) attributes {dimension_semantics = [#tpu.dimension_semantics<parallel>], iteration_bounds = array<i64: 2>, scalar_prefetch = 0 : i64, scratch_operands = 2 : i64, tpu.core_type = #tpu.core_type<tc>, window_params = [{transform_indices = @transform_0, window_bounds = array<i64: 1, 16, 64>}, {pipeline_mode = #tpu.pipeline_mode<synchronous>, transform_indices = @transform_1, window_bounds = array<i64: 15, 64, 64>}, {pipeline_mode = #tpu.pipeline_mode<synchronous>, transform_indices = @transform_2, window_bounds = array<i64: 3, 1, 64>}, {pipeline_mode = #tpu.pipeline_mode<synchronous>, transform_indices = @transform_3, window_bounds = array<i64: 3, 1, 64>}, {pipeline_mode = #tpu.pipeline_mode<synchronous>, transform_indices = @transform_4, window_bounds = array<i64: 3, 1, 64>}, {transform_indices = @transform_5, window_bounds = array<i64: 1, 16, 1>}, {transform_indices = @transform_6, window_bounds = array<i64: 1, 16, 64>}]} {
    %cst = arith.constant 0.000000e+00 : bf16
    %0 = vector.broadcast %cst : bf16 to vector<20x64xbf16>
    %c0 = arith.constant 0 : index
    %c0_0 = arith.constant 0 : index
    %1 = vector.load %arg8[%c0, %c0_0] : memref<20x64xbf16, #tpu.memory_space<vmem>>, vector<20x64xbf16>
    tpu.vector_store %arg8[%c0, %c0_0], %0 {strides = array<i32>} : memref<20x64xbf16, #tpu.memory_space<vmem>>, vector<20x64xbf16>,
    %cst_1 = arith.constant 0.000000e+00 : bf16
    %2 = vector.broadcast %cst_1 : bf16 to vector<20x64xbf16>
    %c0_2 = arith.constant 0 : index
    %c0_3 = arith.constant 0 : index
    %3 = vector.load %arg9[%c0_2, %c0_3] : memref<20x64xbf16, #tpu.memory_space<vmem>>, vector<20x64xbf16>
    tpu.vector_store %arg9[%c0_2, %c0_3], %2 {strides = array<i32>} : memref<20x64xbf16, #tpu.memory_space<vmem>>, vector<20x64xbf16>,
    %c0_4 = arith.constant 0 : index
    %c0_5 = arith.constant 0 : index
    %c0_6 = arith.constant 0 : index
    %4 = vector.load %arg6[%c0_4, %c0_5, %c0_6] : memref<1x16x1xf32, #tpu.memory_space<vmem>>, vector<1x16x1xf32>
    %5 = vector.shape_cast %4 : vector<1x16x1xf32> to vector<16x1xf32>
    %c0_7 = arith.constant 0 : index
    %c0_8 = arith.constant 0 : index
    %c0_9 = arith.constant 0 : index
    %6 = vector.load %arg1[%c0_7, %c0_8, %c0_9] : memref<1x16x64xbf16, #tpu.memory_space<vmem>>, vector<1x16x64xbf16>
    %7 = vector.shape_cast %6 : vector<1x16x64xbf16> to vector<16x64xbf16>
    %8 = arith.extf %7 : vector<16x64xbf16> to vector<16x64xf32>
    %9 = vector.broadcast %5 : vector<16x1xf32> to vector<16x64xf32>
    %10 = arith.mulf %8, %9 : vector<16x64xf32>
    %11 = arith.truncf %10 : vector<16x64xf32> to vector<16x64xbf16>
    %c2 = arith.constant 2 : index
    %c0_10 = arith.constant 0 : index
    %12 = vector.load %arg8[%c2, %c0_10] : memref<20x64xbf16, #tpu.memory_space<vmem>>, vector<16x64xbf16>
    tpu.vector_store %arg8[%c2, %c0_10], %11 {strides = array<i32>} : memref<20x64xbf16, #tpu.memory_space<vmem>>, vector<16x64xbf16>,
    %cst_11 = arith.constant 0.000000e+00 : f32
    %13 = vector.broadcast %cst_11 : f32 to vector<16x64xf32>
    %c0_12 = arith.constant 0 : index
    %c0_13 = arith.constant 0 : index
    %14 = vector.load %arg8[%c0_12, %c0_13] : memref<20x64xbf16, #tpu.memory_space<vmem>>, vector<16x64xbf16>
    %c0_14 = arith.constant 0 : index
    %c0_15 = arith.constant 0 : index
    %c0_16 = arith.constant 0 : index
    %15 = vector.load %arg2[%c0_14, %c0_15, %c0_16] : memref<15x64x64xbf16, #tpu.memory_space<vmem>>, vector<1x64x64xbf16>
    %16 = vector.shape_cast %15 : vector<1x64x64xbf16> to vector<64x64xbf16>
    %cst_17 = arith.constant dense<0.000000e+00> : vector<16x64xf32>
    %17 = tpu.matmul %14, %16, %cst_17 {dimension_numbers = #tpu.dot_dimension_numbers<[1], [0], [0], [1], [0, 0, 1, 1], [], []>} : vector<16x64xbf16>, vector<64x64xbf16>, vector<16x64xf32> -> vector<16x64xf32>
    %18 = arith.addf %13, %17 : vector<16x64xf32>
    %c1 = arith.constant 1 : index
    %c0_18 = arith.constant 0 : index
    %19 = vector.load %arg8[%c1, %c0_18] : memref<20x64xbf16, #tpu.memory_space<vmem>>, vector<16x64xbf16>
    %c1_19 = arith.constant 1 : index
    %c0_20 = arith.constant 0 : index
    %c0_21 = arith.constant 0 : index
    %20 = vector.load %arg2[%c1_19, %c0_20, %c0_21] : memref<15x64x64xbf16, #tpu.memory_space<vmem>>, vector<1x64x64xbf16>
    %21 = vector.shape_cast %20 : vector<1x64x64xbf16> to vector<64x64xbf16>
    %cst_22 = arith.constant dense<0.000000e+00> : vector<16x64xf32>
    %22 = tpu.matmul %19, %21, %cst_22 {dimension_numbers = #tpu.dot_dimension_numbers<[1], [0], [0], [1], [0, 0, 1, 1], [], []>} : vector<16x64xbf16>, vector<64x64xbf16>, vector<16x64xf32> -> vector<16x64xf32>
    %23 = arith.addf %18, %22 : vector<16x64xf32>
    %c2_23 = arith.constant 2 : index
    %c0_24 = arith.constant 0 : index
    %24 = vector.load %arg8[%c2_23, %c0_24] : memref<20x64xbf16, #tpu.memory_space<vmem>>, vector<16x64xbf16>
    %c2_25 = arith.constant 2 : index
    %c0_26 = arith.constant 0 : index
    %c0_27 = arith.constant 0 : index
    %25 = vector.load %arg2[%c2_25, %c0_26, %c0_27] : memref<15x64x64xbf16, #tpu.memory_space<vmem>>, vector<1x64x64xbf16>
    %26 = vector.shape_cast %25 : vector<1x64x64xbf16> to vector<64x64xbf16>
    %cst_28 = arith.constant dense<0.000000e+00> : vector<16x64xf32>
    %27 = tpu.matmul %24, %26, %cst_28 {dimension_numbers = #tpu.dot_dimension_numbers<[1], [0], [0], [1], [0, 0, 1, 1], [], []>} : vector<16x64xbf16>, vector<64x64xbf16>, vector<16x64xf32> -> vector<16x64xf32>
    %28 = arith.addf %23, %27 : vector<16x64xf32>
    %c3 = arith.constant 3 : index
    %c0_29 = arith.constant 0 : index
    %29 = vector.load %arg8[%c3, %c0_29] : memref<20x64xbf16, #tpu.memory_space<vmem>>, vector<16x64xbf16>
    %c3_30 = arith.constant 3 : index
    %c0_31 = arith.constant 0 : index
    %c0_32 = arith.constant 0 : index
    %30 = vector.load %arg2[%c3_30, %c0_31, %c0_32] : memref<15x64x64xbf16, #tpu.memory_space<vmem>>, vector<1x64x64xbf16>
    %31 = vector.shape_cast %30 : vector<1x64x64xbf16> to vector<64x64xbf16>
    %cst_33 = arith.constant dense<0.000000e+00> : vector<16x64xf32>
    %32 = tpu.matmul %29, %31, %cst_33 {dimension_numbers = #tpu.dot_dimension_numbers<[1], [0], [0], [1], [0, 0, 1, 1], [], []>} : vector<16x64xbf16>, vector<64x64xbf16>, vector<16x64xf32> -> vector<16x64xf32>
    %33 = arith.addf %28, %32 : vector<16x64xf32>
    %c4 = arith.constant 4 : index
    %c0_34 = arith.constant 0 : index
    %34 = vector.load %arg8[%c4, %c0_34] : memref<20x64xbf16, #tpu.memory_space<vmem>>, vector<16x64xbf16>
    %c4_35 = arith.constant 4 : index
    %c0_36 = arith.constant 0 : index
    %c0_37 = arith.constant 0 : index
    %35 = vector.load %arg2[%c4_35, %c0_36, %c0_37] : memref<15x64x64xbf16, #tpu.memory_space<vmem>>, vector<1x64x64xbf16>
    %36 = vector.shape_cast %35 : vector<1x64x64xbf16> to vector<64x64xbf16>
    %cst_38 = arith.constant dense<0.000000e+00> : vector<16x64xf32>
    %37 = tpu.matmul %34, %36, %cst_38 {dimension_numbers = #tpu.dot_dimension_numbers<[1], [0], [0], [1], [0, 0, 1, 1], [], []>} : vector<16x64xbf16>, vector<64x64xbf16>, vector<16x64xf32> -> vector<16x64xf32>
    %38 = arith.addf %33, %37 : vector<16x64xf32>
    %c0_39 = arith.constant 0 : index
    %c0_40 = arith.constant 0 : index
    %c0_41 = arith.constant 0 : index
    %39 = vector.load %arg3[%c0_39, %c0_40, %c0_41] : memref<3x1x64xf32, #tpu.memory_space<vmem>>, vector<1x1x64xf32>
    %40 = vector.shape_cast %39 : vector<1x1x64xf32> to vector<1x64xf32>
    %41 = vector.broadcast %40 : vector<1x64xf32> to vector<16x64xf32>
    %42 = arith.addf %38, %41 : vector<16x64xf32>
    %cst_42 = arith.constant dense<0.000000e+00> : vector<16xf32>
    %43 = vector.multi_reduction <add>, %42, %cst_42 [1] : vector<16x64xf32> to vector<16xf32>
    %44 = vector.shape_cast %43 : vector<16xf32> to vector<16x1xf32>
    %cst_43 = arith.constant 6.400000e+01 : f32
    %45 = vector.broadcast %cst_43 : f32 to vector<16x1xf32>
    %46 = arith.divf %44, %45 : vector<16x1xf32>
    %47 = arith.mulf %42, %42 : vector<16x64xf32>
    %cst_44 = arith.constant dense<0.000000e+00> : vector<16xf32>
    %48 = vector.multi_reduction <add>, %47, %cst_44 [1] : vector<16x64xf32> to vector<16xf32>
    %49 = vector.shape_cast %48 : vector<16xf32> to vector<16x1xf32>
    %cst_45 = arith.constant 6.400000e+01 : f32
    %50 = vector.broadcast %cst_45 : f32 to vector<16x1xf32>
    %51 = arith.divf %49, %50 : vector<16x1xf32>
    %52 = arith.mulf %46, %46 : vector<16x1xf32>
    %53 = arith.subf %51, %52 : vector<16x1xf32>
    %54 = vector.broadcast %46 : vector<16x1xf32> to vector<16x64xf32>
    %55 = arith.subf %42, %54 : vector<16x64xf32>
    %cst_46 = arith.constant 9.99999974E-6 : f32
    %56 = vector.broadcast %cst_46 : f32 to vector<16x1xf32>
    %57 = arith.addf %53, %56 : vector<16x1xf32>
    %58 = math.rsqrt %57 : vector<16x1xf32>
    %59 = vector.broadcast %58 : vector<16x1xf32> to vector<16x64xf32>
    %60 = arith.mulf %55, %59 : vector<16x64xf32>
    %c0_47 = arith.constant 0 : index
    %c0_48 = arith.constant 0 : index
    %c0_49 = arith.constant 0 : index
    %61 = vector.load %arg4[%c0_47, %c0_48, %c0_49] : memref<3x1x64xf32, #tpu.memory_space<vmem>>, vector<1x1x64xf32>
    %62 = vector.shape_cast %61 : vector<1x1x64xf32> to vector<1x64xf32>
    %63 = vector.broadcast %62 : vector<1x64xf32> to vector<16x64xf32>
    %64 = arith.mulf %60, %63 : vector<16x64xf32>
    %c0_50 = arith.constant 0 : index
    %c0_51 = arith.constant 0 : index
    %c0_52 = arith.constant 0 : index
    %65 = vector.load %arg5[%c0_50, %c0_51, %c0_52] : memref<3x1x64xf32, #tpu.memory_space<vmem>>, vector<1x1x64xf32>
    %66 = vector.shape_cast %65 : vector<1x1x64xf32> to vector<1x64xf32>
    %67 = vector.broadcast %66 : vector<1x64xf32> to vector<16x64xf32>
    %68 = arith.addf %64, %67 : vector<16x64xf32>
    %cst_53 = arith.constant 0.000000e+00 : f32
    %69 = vector.broadcast %cst_53 : f32 to vector<16x64xf32>
    %70 = arith.cmpf oge, %68, %69 : vector<16x64xf32>
    %cst_54 = arith.constant 2.000000e-01 : f32
    %71 = vector.broadcast %cst_54 : f32 to vector<16x64xf32>
    %72 = arith.mulf %71, %68 : vector<16x64xf32>
    %73 = arith.select %70, %68, %72 : vector<16x64xi1>, vector<16x64xf32>
    %74 = vector.broadcast %5 : vector<16x1xf32> to vector<16x64xf32>
    %75 = arith.mulf %73, %74 : vector<16x64xf32>
    %76 = arith.truncf %75 : vector<16x64xf32> to vector<16x64xbf16>
    %c2_55 = arith.constant 2 : index
    %c0_56 = arith.constant 0 : index
    %77 = vector.load %arg9[%c2_55, %c0_56] : memref<20x64xbf16, #tpu.memory_space<vmem>>, vector<16x64xbf16>
    tpu.vector_store %arg9[%c2_55, %c0_56], %76 {strides = array<i32>} : memref<20x64xbf16, #tpu.memory_space<vmem>>, vector<16x64xbf16>,
    %cst_57 = arith.constant 0.000000e+00 : f32
    %78 = vector.broadcast %cst_57 : f32 to vector<16x64xf32>
    %c0_58 = arith.constant 0 : index
    %c0_59 = arith.constant 0 : index
    %79 = vector.load %arg9[%c0_58, %c0_59] : memref<20x64xbf16, #tpu.memory_space<vmem>>, vector<16x64xbf16>
    %c5 = arith.constant 5 : index
    %c0_60 = arith.constant 0 : index
    %c0_61 = arith.constant 0 : index
    %80 = vector.load %arg2[%c5, %c0_60, %c0_61] : memref<15x64x64xbf16, #tpu.memory_space<vmem>>, vector<1x64x64xbf16>
    %81 = vector.shape_cast %80 : vector<1x64x64xbf16> to vector<64x64xbf16>
    %cst_62 = arith.constant dense<0.000000e+00> : vector<16x64xf32>
    %82 = tpu.matmul %79, %81, %cst_62 {dimension_numbers = #tpu.dot_dimension_numbers<[1], [0], [0], [1], [0, 0, 1, 1], [], []>} : vector<16x64xbf16>, vector<64x64xbf16>, vector<16x64xf32> -> vector<16x64xf32>
    %83 = arith.addf %78, %82 : vector<16x64xf32>
    %c1_63 = arith.constant 1 : index
    %c0_64 = arith.constant 0 : index
    %84 = vector.load %arg9[%c1_63, %c0_64] : memref<20x64xbf16, #tpu.memory_space<vmem>>, vector<16x64xbf16>
    %c6 = arith.constant 6 : index
    %c0_65 = arith.constant 0 : index
    %c0_66 = arith.constant 0 : index
    %85 = vector.load %arg2[%c6, %c0_65, %c0_66] : memref<15x64x64xbf16, #tpu.memory_space<vmem>>, vector<1x64x64xbf16>
    %86 = vector.shape_cast %85 : vector<1x64x64xbf16> to vector<64x64xbf16>
    %cst_67 = arith.constant dense<0.000000e+00> : vector<16x64xf32>
    %87 = tpu.matmul %84, %86, %cst_67 {dimension_numbers = #tpu.dot_dimension_numbers<[1], [0], [0], [1], [0, 0, 1, 1], [], []>} : vector<16x64xbf16>, vector<64x64xbf16>, vector<16x64xf32> -> vector<16x64xf32>
    %88 = arith.addf %83, %87 : vector<16x64xf32>
    %c2_68 = arith.constant 2 : index
    %c0_69 = arith.constant 0 : index
    %89 = vector.load %arg9[%c2_68, %c0_69] : memref<20x64xbf16, #tpu.memory_space<vmem>>, vector<16x64xbf16>
    %c7 = arith.constant 7 : index
    %c0_70 = arith.constant 0 : index
    %c0_71 = arith.constant 0 : index
    %90 = vector.load %arg2[%c7, %c0_70, %c0_71] : memref<15x64x64xbf16, #tpu.memory_space<vmem>>, vector<1x64x64xbf16>
    %91 = vector.shape_cast %90 : vector<1x64x64xbf16> to vector<64x64xbf16>
    %cst_72 = arith.constant dense<0.000000e+00> : vector<16x64xf32>
    %92 = tpu.matmul %89, %91, %cst_72 {dimension_numbers = #tpu.dot_dimension_numbers<[1], [0], [0], [1], [0, 0, 1, 1], [], []>} : vector<16x64xbf16>, vector<64x64xbf16>, vector<16x64xf32> -> vector<16x64xf32>
    %93 = arith.addf %88, %92 : vector<16x64xf32>
    %c3_73 = arith.constant 3 : index
    %c0_74 = arith.constant 0 : index
    %94 = vector.load %arg9[%c3_73, %c0_74] : memref<20x64xbf16, #tpu.memory_space<vmem>>, vector<16x64xbf16>
    %c8 = arith.constant 8 : index
    %c0_75 = arith.constant 0 : index
    %c0_76 = arith.constant 0 : index
    %95 = vector.load %arg2[%c8, %c0_75, %c0_76] : memref<15x64x64xbf16, #tpu.memory_space<vmem>>, vector<1x64x64xbf16>
    %96 = vector.shape_cast %95 : vector<1x64x64xbf16> to vector<64x64xbf16>
    %cst_77 = arith.constant dense<0.000000e+00> : vector<16x64xf32>
    %97 = tpu.matmul %94, %96, %cst_77 {dimension_numbers = #tpu.dot_dimension_numbers<[1], [0], [0], [1], [0, 0, 1, 1], [], []>} : vector<16x64xbf16>, vector<64x64xbf16>, vector<16x64xf32> -> vector<16x64xf32>
    %98 = arith.addf %93, %97 : vector<16x64xf32>
    %c4_78 = arith.constant 4 : index
    %c0_79 = arith.constant 0 : index
    %99 = vector.load %arg9[%c4_78, %c0_79] : memref<20x64xbf16, #tpu.memory_space<vmem>>, vector<16x64xbf16>
    %c9 = arith.constant 9 : index
    %c0_80 = arith.constant 0 : index
    %c0_81 = arith.constant 0 : index
    %100 = vector.load %arg2[%c9, %c0_80, %c0_81] : memref<15x64x64xbf16, #tpu.memory_space<vmem>>, vector<1x64x64xbf16>
    %101 = vector.shape_cast %100 : vector<1x64x64xbf16> to vector<64x64xbf16>
    %cst_82 = arith.constant dense<0.000000e+00> : vector<16x64xf32>
    %102 = tpu.matmul %99, %101, %cst_82 {dimension_numbers = #tpu.dot_dimension_numbers<[1], [0], [0], [1], [0, 0, 1, 1], [], []>} : vector<16x64xbf16>, vector<64x64xbf16>, vector<16x64xf32> -> vector<16x64xf32>
    %103 = arith.addf %98, %102 : vector<16x64xf32>
    %c1_83 = arith.constant 1 : index
    %c0_84 = arith.constant 0 : index
    %c0_85 = arith.constant 0 : index
    %104 = vector.load %arg3[%c1_83, %c0_84, %c0_85] : memref<3x1x64xf32, #tpu.memory_space<vmem>>, vector<1x1x64xf32>
    %105 = vector.shape_cast %104 : vector<1x1x64xf32> to vector<1x64xf32>
    %106 = vector.broadcast %105 : vector<1x64xf32> to vector<16x64xf32>
    %107 = arith.addf %103, %106 : vector<16x64xf32>
    %cst_86 = arith.constant dense<0.000000e+00> : vector<16xf32>
    %108 = vector.multi_reduction <add>, %107, %cst_86 [1] : vector<16x64xf32> to vector<16xf32>
    %109 = vector.shape_cast %108 : vector<16xf32> to vector<16x1xf32>
    %cst_87 = arith.constant 6.400000e+01 : f32
    %110 = vector.broadcast %cst_87 : f32 to vector<16x1xf32>
    %111 = arith.divf %109, %110 : vector<16x1xf32>
    %112 = arith.mulf %107, %107 : vector<16x64xf32>
    %cst_88 = arith.constant dense<0.000000e+00> : vector<16xf32>
    %113 = vector.multi_reduction <add>, %112, %cst_88 [1] : vector<16x64xf32> to vector<16xf32>
    %114 = vector.shape_cast %113 : vector<16xf32> to vector<16x1xf32>
    %cst_89 = arith.constant 6.400000e+01 : f32
    %115 = vector.broadcast %cst_89 : f32 to vector<16x1xf32>
    %116 = arith.divf %114, %115 : vector<16x1xf32>
    %117 = arith.mulf %111, %111 : vector<16x1xf32>
    %118 = arith.subf %116, %117 : vector<16x1xf32>
    %119 = vector.broadcast %111 : vector<16x1xf32> to vector<16x64xf32>
    %120 = arith.subf %107, %119 : vector<16x64xf32>
    %cst_90 = arith.constant 9.99999974E-6 : f32
    %121 = vector.broadcast %cst_90 : f32 to vector<16x1xf32>
    %122 = arith.addf %118, %121 : vector<16x1xf32>
    %123 = math.rsqrt %122 : vector<16x1xf32>
    %124 = vector.broadcast %123 : vector<16x1xf32> to vector<16x64xf32>
    %125 = arith.mulf %120, %124 : vector<16x64xf32>
    %c1_91 = arith.constant 1 : index
    %c0_92 = arith.constant 0 : index
    %c0_93 = arith.constant 0 : index
    %126 = vector.load %arg4[%c1_91, %c0_92, %c0_93] : memref<3x1x64xf32, #tpu.memory_space<vmem>>, vector<1x1x64xf32>
    %127 = vector.shape_cast %126 : vector<1x1x64xf32> to vector<1x64xf32>
    %128 = vector.broadcast %127 : vector<1x64xf32> to vector<16x64xf32>
    %129 = arith.mulf %125, %128 : vector<16x64xf32>
    %c1_94 = arith.constant 1 : index
    %c0_95 = arith.constant 0 : index
    %c0_96 = arith.constant 0 : index
    %130 = vector.load %arg5[%c1_94, %c0_95, %c0_96] : memref<3x1x64xf32, #tpu.memory_space<vmem>>, vector<1x1x64xf32>
    %131 = vector.shape_cast %130 : vector<1x1x64xf32> to vector<1x64xf32>
    %132 = vector.broadcast %131 : vector<1x64xf32> to vector<16x64xf32>
    %133 = arith.addf %129, %132 : vector<16x64xf32>
    %cst_97 = arith.constant 0.000000e+00 : f32
    %134 = vector.broadcast %cst_97 : f32 to vector<16x64xf32>
    %135 = arith.cmpf oge, %133, %134 : vector<16x64xf32>
    %cst_98 = arith.constant 2.000000e-01 : f32
    %136 = vector.broadcast %cst_98 : f32 to vector<16x64xf32>
    %137 = arith.mulf %136, %133 : vector<16x64xf32>
    %138 = arith.select %135, %133, %137 : vector<16x64xi1>, vector<16x64xf32>
    %139 = vector.broadcast %5 : vector<16x1xf32> to vector<16x64xf32>
    %140 = arith.mulf %138, %139 : vector<16x64xf32>
    %141 = arith.truncf %140 : vector<16x64xf32> to vector<16x64xbf16>
    %c2_99 = arith.constant 2 : index
    %c0_100 = arith.constant 0 : index
    %142 = vector.load %arg8[%c2_99, %c0_100] : memref<20x64xbf16, #tpu.memory_space<vmem>>, vector<16x64xbf16>
    tpu.vector_store %arg8[%c2_99, %c0_100], %141 {strides = array<i32>} : memref<20x64xbf16, #tpu.memory_space<vmem>>, vector<16x64xbf16>,
    %cst_101 = arith.constant 0.000000e+00 : f32
    %143 = vector.broadcast %cst_101 : f32 to vector<16x64xf32>
    %c0_102 = arith.constant 0 : index
    %c0_103 = arith.constant 0 : index
    %144 = vector.load %arg8[%c0_102, %c0_103] : memref<20x64xbf16, #tpu.memory_space<vmem>>, vector<16x64xbf16>
    %c10 = arith.constant 10 : index
    %c0_104 = arith.constant 0 : index
    %c0_105 = arith.constant 0 : index
    %145 = vector.load %arg2[%c10, %c0_104, %c0_105] : memref<15x64x64xbf16, #tpu.memory_space<vmem>>, vector<1x64x64xbf16>
    %146 = vector.shape_cast %145 : vector<1x64x64xbf16> to vector<64x64xbf16>
    %cst_106 = arith.constant dense<0.000000e+00> : vector<16x64xf32>
    %147 = tpu.matmul %144, %146, %cst_106 {dimension_numbers = #tpu.dot_dimension_numbers<[1], [0], [0], [1], [0, 0, 1, 1], [], []>} : vector<16x64xbf16>, vector<64x64xbf16>, vector<16x64xf32> -> vector<16x64xf32>
    %148 = arith.addf %143, %147 : vector<16x64xf32>
    %c1_107 = arith.constant 1 : index
    %c0_108 = arith.constant 0 : index
    %149 = vector.load %arg8[%c1_107, %c0_108] : memref<20x64xbf16, #tpu.memory_space<vmem>>, vector<16x64xbf16>
    %c11 = arith.constant 11 : index
    %c0_109 = arith.constant 0 : index
    %c0_110 = arith.constant 0 : index
    %150 = vector.load %arg2[%c11, %c0_109, %c0_110] : memref<15x64x64xbf16, #tpu.memory_space<vmem>>, vector<1x64x64xbf16>
    %151 = vector.shape_cast %150 : vector<1x64x64xbf16> to vector<64x64xbf16>
    %cst_111 = arith.constant dense<0.000000e+00> : vector<16x64xf32>
    %152 = tpu.matmul %149, %151, %cst_111 {dimension_numbers = #tpu.dot_dimension_numbers<[1], [0], [0], [1], [0, 0, 1, 1], [], []>} : vector<16x64xbf16>, vector<64x64xbf16>, vector<16x64xf32> -> vector<16x64xf32>
    %153 = arith.addf %148, %152 : vector<16x64xf32>
    %c2_112 = arith.constant 2 : index
    %c0_113 = arith.constant 0 : index
    %154 = vector.load %arg8[%c2_112, %c0_113] : memref<20x64xbf16, #tpu.memory_space<vmem>>, vector<16x64xbf16>
    %c12 = arith.constant 12 : index
    %c0_114 = arith.constant 0 : index
    %c0_115 = arith.constant 0 : index
    %155 = vector.load %arg2[%c12, %c0_114, %c0_115] : memref<15x64x64xbf16, #tpu.memory_space<vmem>>, vector<1x64x64xbf16>
    %156 = vector.shape_cast %155 : vector<1x64x64xbf16> to vector<64x64xbf16>
    %cst_116 = arith.constant dense<0.000000e+00> : vector<16x64xf32>
    %157 = tpu.matmul %154, %156, %cst_116 {dimension_numbers = #tpu.dot_dimension_numbers<[1], [0], [0], [1], [0, 0, 1, 1], [], []>} : vector<16x64xbf16>, vector<64x64xbf16>, vector<16x64xf32> -> vector<16x64xf32>
    %158 = arith.addf %153, %157 : vector<16x64xf32>
    %c3_117 = arith.constant 3 : index
    %c0_118 = arith.constant 0 : index
    %159 = vector.load %arg8[%c3_117, %c0_118] : memref<20x64xbf16, #tpu.memory_space<vmem>>, vector<16x64xbf16>
    %c13 = arith.constant 13 : index
    %c0_119 = arith.constant 0 : index
    %c0_120 = arith.constant 0 : index
    %160 = vector.load %arg2[%c13, %c0_119, %c0_120] : memref<15x64x64xbf16, #tpu.memory_space<vmem>>, vector<1x64x64xbf16>
    %161 = vector.shape_cast %160 : vector<1x64x64xbf16> to vector<64x64xbf16>
    %cst_121 = arith.constant dense<0.000000e+00> : vector<16x64xf32>
    %162 = tpu.matmul %159, %161, %cst_121 {dimension_numbers = #tpu.dot_dimension_numbers<[1], [0], [0], [1], [0, 0, 1, 1], [], []>} : vector<16x64xbf16>, vector<64x64xbf16>, vector<16x64xf32> -> vector<16x64xf32>
    %163 = arith.addf %158, %162 : vector<16x64xf32>
    %c4_122 = arith.constant 4 : index
    %c0_123 = arith.constant 0 : index
    %164 = vector.load %arg8[%c4_122, %c0_123] : memref<20x64xbf16, #tpu.memory_space<vmem>>, vector<16x64xbf16>
    %c14 = arith.constant 14 : index
    %c0_124 = arith.constant 0 : index
    %c0_125 = arith.constant 0 : index
    %165 = vector.load %arg2[%c14, %c0_124, %c0_125] : memref<15x64x64xbf16, #tpu.memory_space<vmem>>, vector<1x64x64xbf16>
    %166 = vector.shape_cast %165 : vector<1x64x64xbf16> to vector<64x64xbf16>
    %cst_126 = arith.constant dense<0.000000e+00> : vector<16x64xf32>
    %167 = tpu.matmul %164, %166, %cst_126 {dimension_numbers = #tpu.dot_dimension_numbers<[1], [0], [0], [1], [0, 0, 1, 1], [], []>} : vector<16x64xbf16>, vector<64x64xbf16>, vector<16x64xf32> -> vector<16x64xf32>
    %168 = arith.addf %163, %167 : vector<16x64xf32>
    %c2_127 = arith.constant 2 : index
    %c0_128 = arith.constant 0 : index
    %c0_129 = arith.constant 0 : index
    %169 = vector.load %arg3[%c2_127, %c0_128, %c0_129] : memref<3x1x64xf32, #tpu.memory_space<vmem>>, vector<1x1x64xf32>
    %170 = vector.shape_cast %169 : vector<1x1x64xf32> to vector<1x64xf32>
    %171 = vector.broadcast %170 : vector<1x64xf32> to vector<16x64xf32>
    %172 = arith.addf %168, %171 : vector<16x64xf32>
    %cst_130 = arith.constant dense<0.000000e+00> : vector<16xf32>
    %173 = vector.multi_reduction <add>, %172, %cst_130 [1] : vector<16x64xf32> to vector<16xf32>
    %174 = vector.shape_cast %173 : vector<16xf32> to vector<16x1xf32>
    %cst_131 = arith.constant 6.400000e+01 : f32
    %175 = vector.broadcast %cst_131 : f32 to vector<16x1xf32>
    %176 = arith.divf %174, %175 : vector<16x1xf32>
    %177 = arith.mulf %172, %172 : vector<16x64xf32>
    %cst_132 = arith.constant dense<0.000000e+00> : vector<16xf32>
    %178 = vector.multi_reduction <add>, %177, %cst_132 [1] : vector<16x64xf32> to vector<16xf32>
    %179 = vector.shape_cast %178 : vector<16xf32> to vector<16x1xf32>
    %cst_133 = arith.constant 6.400000e+01 : f32
    %180 = vector.broadcast %cst_133 : f32 to vector<16x1xf32>
    %181 = arith.divf %179, %180 : vector<16x1xf32>
    %182 = arith.mulf %176, %176 : vector<16x1xf32>
    %183 = arith.subf %181, %182 : vector<16x1xf32>
    %184 = vector.broadcast %176 : vector<16x1xf32> to vector<16x64xf32>
    %185 = arith.subf %172, %184 : vector<16x64xf32>
    %cst_134 = arith.constant 9.99999974E-6 : f32
    %186 = vector.broadcast %cst_134 : f32 to vector<16x1xf32>
    %187 = arith.addf %183, %186 : vector<16x1xf32>
    %188 = math.rsqrt %187 : vector<16x1xf32>
    %189 = vector.broadcast %188 : vector<16x1xf32> to vector<16x64xf32>
    %190 = arith.mulf %185, %189 : vector<16x64xf32>
    %c2_135 = arith.constant 2 : index
    %c0_136 = arith.constant 0 : index
    %c0_137 = arith.constant 0 : index
    %191 = vector.load %arg4[%c2_135, %c0_136, %c0_137] : memref<3x1x64xf32, #tpu.memory_space<vmem>>, vector<1x1x64xf32>
    %192 = vector.shape_cast %191 : vector<1x1x64xf32> to vector<1x64xf32>
    %193 = vector.broadcast %192 : vector<1x64xf32> to vector<16x64xf32>
    %194 = arith.mulf %190, %193 : vector<16x64xf32>
    %c2_138 = arith.constant 2 : index
    %c0_139 = arith.constant 0 : index
    %c0_140 = arith.constant 0 : index
    %195 = vector.load %arg5[%c2_138, %c0_139, %c0_140] : memref<3x1x64xf32, #tpu.memory_space<vmem>>, vector<1x1x64xf32>
    %196 = vector.shape_cast %195 : vector<1x1x64xf32> to vector<1x64xf32>
    %197 = vector.broadcast %196 : vector<1x64xf32> to vector<16x64xf32>
    %198 = arith.addf %194, %197 : vector<16x64xf32>
    %cst_141 = arith.constant 0.000000e+00 : f32
    %199 = vector.broadcast %cst_141 : f32 to vector<16x64xf32>
    %200 = arith.cmpf oge, %198, %199 : vector<16x64xf32>
    %cst_142 = arith.constant 2.000000e-01 : f32
    %201 = vector.broadcast %cst_142 : f32 to vector<16x64xf32>
    %202 = arith.mulf %201, %198 : vector<16x64xf32>
    %203 = arith.select %200, %198, %202 : vector<16x64xi1>, vector<16x64xf32>
    %204 = vector.broadcast %5 : vector<16x1xf32> to vector<16x64xf32>
    %205 = arith.mulf %203, %204 : vector<16x64xf32>
    %206 = arith.truncf %205 : vector<16x64xf32> to vector<16x64xbf16>
    %c0_143 = arith.constant 0 : index
    %c0_144 = arith.constant 0 : index
    %c0_145 = arith.constant 0 : index
    %207 = vector.load %arg7[%c0_143, %c0_144, %c0_145] : memref<1x16x64xbf16, #tpu.memory_space<vmem>>, vector<1x16x64xbf16>
    %208 = vector.shape_cast %207 : vector<1x16x64xbf16> to vector<16x64xbf16>
    %209 = vector.shape_cast %206 : vector<16x64xbf16> to vector<1x16x64xbf16>
    tpu.vector_store %arg7[%c0_143, %c0_144, %c0_145], %209 {strides = array<i32>} : memref<1x16x64xbf16, #tpu.memory_space<vmem>>, vector<1x16x64xbf16>,
    return
  }
  func.func @transform_0(%arg0: i32) -> (i32, i32, i32) {
    %c0_i32 = arith.constant 0 : i32
    %c0_i32_0 = arith.constant 0 : i32
    %c0_i32_1 = arith.constant 0 : i32
    return %arg0, %c0_i32, %c0_i32_0 : i32, i32, i32
  }
  func.func @transform_1(%arg0: i32) -> (i32, i32, i32) {
    %c0_i32 = arith.constant 0 : i32
    %c0_i32_0 = arith.constant 0 : i32
    %c0_i32_1 = arith.constant 0 : i32
    %c0_i32_2 = arith.constant 0 : i32
    return %c0_i32, %c0_i32_0, %c0_i32_1 : i32, i32, i32
  }
  func.func @transform_2(%arg0: i32) -> (i32, i32, i32) {
    %c0_i32 = arith.constant 0 : i32
    %c0_i32_0 = arith.constant 0 : i32
    %c0_i32_1 = arith.constant 0 : i32
    %c0_i32_2 = arith.constant 0 : i32
    return %c0_i32, %c0_i32_0, %c0_i32_1 : i32, i32, i32
  }
  func.func @transform_3(%arg0: i32) -> (i32, i32, i32) {
    %c0_i32 = arith.constant 0 : i32
    %c0_i32_0 = arith.constant 0 : i32
    %c0_i32_1 = arith.constant 0 : i32
    %c0_i32_2 = arith.constant 0 : i32
    return %c0_i32, %c0_i32_0, %c0_i32_1 : i32, i32, i32
  }
  func.func @transform_4(%arg0: i32) -> (i32, i32, i32) {
    %c0_i32 = arith.constant 0 : i32
    %c0_i32_0 = arith.constant 0 : i32
    %c0_i32_1 = arith.constant 0 : i32
    %c0_i32_2 = arith.constant 0 : i32
    return %c0_i32, %c0_i32_0, %c0_i32_1 : i32, i32, i32
  }
  func.func @transform_5(%arg0: i32) -> (i32, i32, i32) {
    %c0_i32 = arith.constant 0 : i32
    %c0_i32_0 = arith.constant 0 : i32
    %c0_i32_1 = arith.constant 0 : i32
    return %arg0, %c0_i32, %c0_i32_0 : i32, i32, i32
  }
  func.func @transform_6(%arg0: i32) -> (i32, i32, i32) {
    %c0_i32 = arith.constant 0 : i32
    %c0_i32_0 = arith.constant 0 : i32
    %c0_i32_1 = arith.constant 0 : i32
    return %arg0, %c0_i32, %c0_i32_0 : i32, i32, i32
  }
}

</mosaic_0001>

<llo_original>
// kernel: tpu_custom_call.1
$region0: #{tpu_custom_call.1}
  #allocation0 [shape = 'u32[]', space=smem, size = 0x4, offset = 0x4, fixed_abs, tag = 'smem constant byte address 0x4 - core index']
  #allocation1 [shape = 'u32[144,128]{1,0:T(1,128)}', space=vmem, size = 0x12000, scoped, tag = 'internal scratch']
  #allocation2 [shape = 'bf16[20,64]{1,0:T(8,128)(2,1)}', space=vmem, size = 0x1800, scoped, tag = 'scratch operand']
  #allocation3 [shape = 'bf16[20,64]{1,0:T(8,128)(2,1)}', space=vmem, size = 0x1800, scoped, tag = 'scratch operand']
  %s0 = inlined_call_operand.vmem [shape: bf16[2,16,64], index: 0, kind: input, shape index: {}]
  %s1 = inlined_call_operand.hbm [shape: bf16[15,64,64], index: 1, kind: input, shape index: {}]
  %s2 = inlined_call_operand.vmem [shape: f32[3,1,64], index: 2, kind: input, shape index: {}]
  %s3 = inlined_call_operand.vmem [shape: f32[3,1,64], index: 3, kind: input, shape index: {}]
  %s4 = inlined_call_operand.vmem [shape: f32[3,1,64], index: 4, kind: input, shape index: {}]
  %s5 = inlined_call_operand.vmem [shape: f32[2,16,1], index: 5, kind: input, shape index: {}]
  %s6 = inlined_call_operand.hbm [shape: bf16[2,16,64], index: 6, kind: output, shape index: {}]
  %s7 = sld [smem:[#allocation0]]
  $region61: #{tpu_custom_call.1} parent=0
    _
  %s9 = ssub.s32 1, %s7
  %s10 = scalar_select 0, %s9, %s7
  $region1: #{tpu_custom_call.1} parent=0
    #allocation4 [shape = 'u8[245760]{0}', space=vmem, size = 0x3c000, scoped, tag = 'input window, operand 1, single buffered']
    #allocation5 [shape = 's32[2]{0}', space=sflag, size = 0x8, scoped, tag = 'scoped memory for tpu_custom_call.1']
    #allocation6 [shape = 's32[2]{0}', space=sflag, size = 0x8, scoped, tag = 'scoped memory for tpu_custom_call.1']
    #allocation7 [shape = 'u8[8192]{0}', space=vmem, size = 0x2000, scoped, tag = 'output window, operand 0']
    %11 = vsyncpa [#allocation5], 0
    %12 = vsyncpa [#allocation6], 0
    %s13 = scalar_lea.sflag [#allocation6], 1
    %14 = vsyncpa %s13, 0
    loop: start=0, step=1, limit=4
    $region2: #{tpu_custom_call.1} parent=1 // loop_pre_header
      _
    $region3: #{tpu_custom_call.1} parent=1 // loop_header
      %s16 = sphi 0, %s20
      %p17 = scmp.ge.s32.totalorder %s16, 4
      %s26 = sphi 0, %s28
      %s29 = sphi 0, %s26
      %s30 = sphi 0, %s29
      %s46 = sphi 0, %s30
      %s50 = sphi 0, %s50
      %s52 = sphi 0, %s50
      %s53 = sphi 0, %s52
      %s67 = sphi 0, %s53
      %s71 = sphi 0, %s71
      %s73 = sphi 0, %s71
      %s74 = sphi 0, %s73
      %s88 = sphi 0, %s74
      %s92 = sphi 0, %s92
      %s94 = sphi 0, %s92
      %s95 = sphi 0, %s94
      %s109 = sphi 0, %s95
      %s113 = sphi 0, %s113
      %s115 = sphi 0, %s113
      %s116 = sphi 0, %s115
      %s130 = sphi 0, %s116
      %s136 = sphi 0, %s138
      %s139 = sphi 0, %s136
      %s140 = sphi 0, %s139
      %s156 = sphi 0, %s140
      %s162 = sphi 0, %s164
      %s165 = sphi 0, %s162
      %s166 = sphi 0, %s165
      %s182 = sphi 0, %s166
    $region4: #{tpu_custom_call.1} parent=1 // loop_header_branch
      %19 = sbr.rel (%p17) target = $region8
    $region5: #{tpu_custom_call.1} parent=1 // loop_body
      %s21 = ssub.s32 %s16, 1
      %s22 = ssub.s32 %s16, 2
      %s23 = sadd.s32 %s16, 1
      %s24 = ssub.s32 %s16, %s23
      %p25 = scmp.eq.s32.totalorder %s24, 0
      %s27 = sadd.s32 %s26, 1
      %s28 = scalar_select %p25, %s26, %s27
      %p31 = pneg %p25
      %p32 = scmp.eq.s32.totalorder %s16, 1
      %p33 = por %p31, %p32
      %p34 = scmp.ne.s32.totalorder %s26, %s29
      %p35 = scmp.eq.s32.totalorder %s16, 0
      %p36 = por %p34, %p35
      %p37 = scmp.ne.s32.totalorder %s26, %s29
      %p38 = scmp.eq.s32.totalorder %s21, 1
      %p39 = por %p37, %p38
      %p40 = scmp.ne.s32.totalorder %s29, %s30
      %p41 = scmp.eq.s32.totalorder %s21, 0
      %p42 = por %p40, %p41
      %p43 = scmp.ne.s32.totalorder %s29, %s30
      %p44 = scmp.eq.s32.totalorder %s22, 1
      %p45 = por %p43, %p44
      %p47 = scmp.ne.s32.totalorder %s30, %s46
      %p48 = scmp.eq.s32.totalorder %s22, 0
      %p49 = por %p47, %p48
      %s51 = sadd.s32 %s50, 1
      %p54 = scmp.eq.s32.totalorder %s16, 1
      %p55 = scmp.ne.s32.totalorder %s50, %s52
      %p56 = scmp.eq.s32.totalorder %s16, 0
      %p57 = por %p55, %p56
      %p58 = scmp.ne.s32.totalorder %s50, %s52
      %p59 = scmp.eq.s32.totalorder %s21, 1
      %p60 = por %p58, %p59
      %p61 = scmp.ne.s32.totalorder %s52, %s53
      %p62 = scmp.eq.s32.totalorder %s21, 0
      %p63 = por %p61, %p62
      %p64 = scmp.ne.s32.totalorder %s52, %s53
      %p65 = scmp.eq.s32.totalorder %s22, 1
      %p66 = por %p64, %p65
      %p68 = scmp.ne.s32.totalorder %s53, %s67
      %p69 = scmp.eq.s32.totalorder %s22, 0
      %p70 = por %p68, %p69
      %s72 = sadd.s32 %s71, 1
      %p75 = scmp.eq.s32.totalorder %s16, 1
      %p76 = scmp.ne.s32.totalorder %s71, %s73
      %p77 = scmp.eq.s32.totalorder %s16, 0
      %p78 = por %p76, %p77
      %p79 = scmp.ne.s32.totalorder %s71, %s73
      %p80 = scmp.eq.s32.totalorder %s21, 1
      %p81 = por %p79, %p80
      %p82 = scmp.ne.s32.totalorder %s73, %s74
      %p83 = scmp.eq.s32.totalorder %s21, 0
      %p84 = por %p82, %p83
      %p85 = scmp.ne.s32.totalorder %s73, %s74
      %p86 = scmp.eq.s32.totalorder %s22, 1
      %p87 = por %p85, %p86
      %p89 = scmp.ne.s32.totalorder %s74, %s88
      %p90 = scmp.eq.s32.totalorder %s22, 0
      %p91 = por %p89, %p90
      %s93 = sadd.s32 %s92, 1
      %p96 = scmp.eq.s32.totalorder %s16, 1
      %p97 = scmp.ne.s32.totalorder %s92, %s94
      %p98 = scmp.eq.s32.totalorder %s16, 0
      %p99 = por %p97, %p98
      %p100 = scmp.ne.s32.totalorder %s92, %s94
      %p101 = scmp.eq.s32.totalorder %s21, 1
      %p102 = por %p100, %p101
      %p103 = scmp.ne.s32.totalorder %s94, %s95
      %p104 = scmp.eq.s32.totalorder %s21, 0
      %p105 = por %p103, %p104
      %p106 = scmp.ne.s32.totalorder %s94, %s95
      %p107 = scmp.eq.s32.totalorder %s22, 1
      %p108 = por %p106, %p107
      %p110 = scmp.ne.s32.totalorder %s95, %s109
      %p111 = scmp.eq.s32.totalorder %s22, 0
      %p112 = por %p110, %p111
      %s114 = sadd.s32 %s113, 1
      %p117 = scmp.eq.s32.totalorder %s16, 1
      %p118 = scmp.ne.s32.totalorder %s113, %s115
      %p119 = scmp.eq.s32.totalorder %s16, 0
      %p120 = por %p118, %p119
      %p121 = scmp.ne.s32.totalorder %s113, %s115
      %p122 = scmp.eq.s32.totalorder %s21, 1
      %p123 = por %p121, %p122
      %p124 = scmp.ne.s32.totalorder %s115, %s116
      %p125 = scmp.eq.s32.totalorder %s21, 0
      %p126 = por %p124, %p125
      %p127 = scmp.ne.s32.totalorder %s115, %s116
      %p128 = scmp.eq.s32.totalorder %s22, 1
      %p129 = por %p127, %p128
      %p131 = scmp.ne.s32.totalorder %s116, %s130
      %p132 = scmp.eq.s32.totalorder %s22, 0
      %p133 = por %p131, %p132
      %s134 = ssub.s32 %s16, %s23
      %p135 = scmp.eq.s32.totalorder %s134, 0
      %s137 = sadd.s32 %s136, 1
      %s138 = scalar_select %p135, %s136, %s137
      %p141 = pneg %p135
      %p142 = scmp.eq.s32.totalorder %s16, 1
      %p143 = por %p141, %p142
      %p144 = scmp.ne.s32.totalorder %s136, %s139
      %p145 = scmp.eq.s32.totalorder %s16, 0
      %p146 = por %p144, %p145
      %p147 = scmp.ne.s32.totalorder %s136, %s139
      %p148 = scmp.eq.s32.totalorder %s21, 1
      %p149 = por %p147, %p148
      %p150 = scmp.ne.s32.totalorder %s139, %s140
      %p151 = scmp.eq.s32.totalorder %s21, 0
      %p152 = por %p150, %p151
      %p153 = scmp.ne.s32.totalorder %s139, %s140
      %p154 = scmp.eq.s32.totalorder %s22, 1
      %p155 = por %p153, %p154
      %p157 = scmp.ne.s32.totalorder %s140, %s156
      %p158 = scmp.eq.s32.totalorder %s22, 0
      %p159 = por %p157, %p158
      %s160 = ssub.s32 %s16, %s23
      %p161 = scmp.eq.s32.totalorder %s160, 0
      %s163 = sadd.s32 %s162, 1
      %s164 = scalar_select %p161, %s162, %s163
      %p167 = pneg %p161
      %p168 = scmp.eq.s32.totalorder %s16, 1
      %p169 = por %p167, %p168
      %p170 = scmp.ne.s32.totalorder %s162, %s165
      %p171 = scmp.eq.s32.totalorder %s16, 0
      %p172 = por %p170, %p171
      %p173 = scmp.ne.s32.totalorder %s162, %s165
      %p174 = scmp.eq.s32.totalorder %s21, 1
      %p175 = por %p173, %p174
      %p176 = scmp.ne.s32.totalorder %s165, %s166
      %p177 = scmp.eq.s32.totalorder %s21, 0
      %p178 = por %p176, %p177
      %p179 = scmp.ne.s32.totalorder %s165, %s166
      %p180 = scmp.eq.s32.totalorder %s22, 1
      %p181 = por %p179, %p180
      %p183 = scmp.ne.s32.totalorder %s166, %s182
      %p184 = scmp.eq.s32.totalorder %s22, 0
      %p185 = por %p183, %p184
      %p186 = scmp.le.s32.totalorder 1, %s16
      %p187 = scmp.lt.s32.totalorder %s16, 3
      %p188 = pnand %p186, %p187
      %p189 = pneg %p188
      // Predicated region
      $region9: #{tpu_custom_call.1} parent=5 // pred_check
        _
      $region10: #{tpu_custom_call.1} parent=5 // pred_check_branch
        %191 = sbr.rel (%p188) target = $region12
      $region11: #{tpu_custom_call.1} parent=5 // pred_region
        %s192 = ssub.s32 %s16, 1
        // Predicated region
        $region13: #{tpu_custom_call.1} parent=11 // pred_check
          %p193 = pneg %p63
        $region14: #{tpu_custom_call.1} parent=11 // pred_check_branch
          %195 = sbr.rel (%p193) target = $region16
        $region15: #{tpu_custom_call.1} parent=11 // pred_region
          %s197 = ssub.s32 7680, 7680
          %198 = vsyncadd [#allocation5], %s197
          %s199 = sshll.u32 [#allocation4], 4
          %s200 = int_to_ptr.vmem [resolvable:$true] %s199
          %205 = dma.hbm_to_vmem [thread:$0]  %s1, 7680, %s200, [#allocation5], 64, 64, 4
        $region16: #{tpu_custom_call.1} parent=11 // pred_fallthru
          _
        // Predicated region
        $region17: #{tpu_custom_call.1} parent=11 // pred_check
          %p206 = pneg %p84
        $region18: #{tpu_custom_call.1} parent=11 // pred_check_branch
          %208 = sbr.rel (%p206) target = $region20
        $region19: #{tpu_custom_call.1} parent=11 // pred_region
          _
        $region20: #{tpu_custom_call.1} parent=11 // pred_fallthru
          _
        // Predicated region
        $region21: #{tpu_custom_call.1} parent=11 // pred_check
          %p209 = pneg %p105
        $region22: #{tpu_custom_call.1} parent=11 // pred_check_branch
          %211 = sbr.rel (%p209) target = $region24
        $region23: #{tpu_custom_call.1} parent=11 // pred_region
          _
        $region24: #{tpu_custom_call.1} parent=11 // pred_fallthru
          _
        // Predicated region
        $region25: #{tpu_custom_call.1} parent=11 // pred_check
          %p212 = pneg %p126
        $region26: #{tpu_custom_call.1} parent=11 // pred_check_branch
          %214 = sbr.rel (%p212) target = $region28
        $region27: #{tpu_custom_call.1} parent=11 // pred_region
          _
        $region28: #{tpu_custom_call.1} parent=11 // pred_fallthru
          _
      $region12: #{tpu_custom_call.1} parent=5 // pred_fallthru
        _
      %p215 = scmp.lt.s32.totalorder %s16, 2
      // Predicated region
      $region29: #{tpu_custom_call.1} parent=5 // pred_check
        %p216 = pneg %p215
      $region30: #{tpu_custom_call.1} parent=5 // pred_check_branch
        %218 = sbr.rel (%p216) target = $region32
      $region31: #{tpu_custom_call.1} parent=5 // pred_region
        // Predicated region
        $region33: #{tpu_custom_call.1} parent=31 // pred_check
          %p219 = pneg %p36
        $region34: #{tpu_custom_call.1} parent=31 // pred_check_branch
          %221 = sbr.rel (%p219) target = $region36
        $region35: #{tpu_custom_call.1} parent=31 // pred_region
          %p222 = scmp.lt.s32.totalorder %s16, 1
          %s223 = scalar_select %p222, %s16, 1
          %s224 = smul.addr %s223, 2
          %s225 = smul.addr %s224, 4
          %s226 = scalar_lea.vmem %s0, %s225
        $region36: #{tpu_custom_call.1} parent=31 // pred_fallthru
          _
        // Predicated region
        $region37: #{tpu_custom_call.1} parent=31 // pred_check
          %p227 = pneg %p146
        $region38: #{tpu_custom_call.1} parent=31 // pred_check_branch
          %229 = sbr.rel (%p227) target = $region40
        $region39: #{tpu_custom_call.1} parent=31 // pred_region
          %p230 = scmp.lt.s32.totalorder %s16, 1
          %s231 = scalar_select %p230, %s16, 1
          %s232 = smul.addr %s231, 2
          %s233 = smul.addr %s232, 8
          %s234 = scalar_lea.vmem %s5, %s233
        $region40: #{tpu_custom_call.1} parent=31 // pred_fallthru
          _
      $region32: #{tpu_custom_call.1} parent=5 // pred_fallthru
        _
      %p235 = scmp.le.s32.totalorder 1, %s16
      %p236 = scmp.lt.s32.totalorder %s16, 3
      %p237 = pnand %p235, %p236
      %p238 = pneg %p237
      // Predicated region
      $region41: #{tpu_custom_call.1} parent=5 // pred_check
        _
      $region42: #{tpu_custom_call.1} parent=5 // pred_check_branch
        %240 = sbr.rel (%p237) target = $region44
      $region43: #{tpu_custom_call.1} parent=5 // pred_region
        %s241 = ssub.s32 %s16, 1
        // Predicated region
        $region45: #{tpu_custom_call.1} parent=43 // pred_check
          %p242 = pneg %p63
        $region46: #{tpu_custom_call.1} parent=43 // pred_check_branch
          %244 = sbr.rel (%p242) target = $region48
        $region47: #{tpu_custom_call.1} parent=43 // pred_region
          %245 = dma.done [#allocation5], 7680
        $region48: #{tpu_custom_call.1} parent=43 // pred_fallthru
          _
        %p246 = scmp.lt.s32.totalorder %s21, 1
        %s247 = scalar_select %p246, %s21, 1
        %s248 = smul.addr %s247, 2
        %s249 = smul.addr %s248, 4
        %s250 = scalar_lea.vmem %s0, %s249
        %p251 = pneg %p42
        %p252 = pneg %p39
        %p253 = pneg %p63
        %p254 = pneg %p60
        %p255 = pneg %p84
        %p256 = pneg %p81
        %p257 = pneg %p105
        %p258 = pneg %p102
        %p259 = pneg %p126
        %p260 = pneg %p123
        %p261 = scmp.lt.s32.totalorder %s21, 1
        %s262 = scalar_select %p261, %s21, 1
        %s263 = smul.addr %s262, 2
        %s264 = smul.addr %s263, 8
        %s265 = scalar_lea.vmem %s5, %s264
        %p266 = pneg %p152
        %p267 = pneg %p149
        %p268 = pneg %p178
        %p269 = pneg %p175
        %s270 = sand.u32 %s165, 1
        %s271 = scalar_lea.sflag [#allocation6], %s270
        %s272 = sand.u32 %s165, 1
        %s273 = smul.addr %s272, 8
        %s274 = scalar_lea.vmem [#allocation7], %s273
        %p275 = scmp.lt.s32.totalorder %s21, 1
        %s276 = scalar_select %p275, %s21, 1
        %s277 = smul.addr %s276, 2
        %s278 = smul.addr %s277, 4
        %s279 = scalar_lea.vmem %s0, %s278
        %p280 = scmp.lt.s32.totalorder %s21, 1
        %s281 = scalar_select %p280, %s21, 1
        %s282 = smul.addr %s281, 2
        %s283 = smul.addr %s282, 8
        %s284 = scalar_lea.vmem %s5, %s283
        %vm286 = vcmask 519168
        %287 = vst.msk [vmem:[#allocation2] sm:$0xf] %vm286, 0
        %288 = vst.msk [vmem:[#allocation2 + $0x4] sm:$0xf] %vm286, 0
        %vm289 = vcmask 517120
        %290 = vst.msk [vmem:[#allocation2 + $0x8] sm:$0x3] %vm289, 0
        %291 = vst.msk [vmem:[#allocation3] sm:$0xf] %vm286, 0
        %292 = vst.msk [vmem:[#allocation3 + $0x4] sm:$0xf] %vm286, 0
        %293 = vst.msk [vmem:[#allocation3 + $0x8] sm:$0x3] %vm289, 0
        %v294 = vld [vmem:[%s284] sm:$0xff]
        %v295 = vld [vmem:[%s284 + $0x8] sm:$0xff]
        %v296 = vld [vmem:[%s279] sm:$0xf]
        %v297 = vld [vmem:[%s279 + $0x4] sm:$0xf]
        %v298 = vunpack.c.l.bf16 %v296
        %v299 = vunpack.c.l.bf16 %v297
        %301 = vset.pattern.permute.xlu0 0
        %302 = vperm.xlu0 %301, %v294
        %v303 = vpop.permute.xlu0 %302
        %306 = vset.pattern.permute.xlu0 0
        %307 = vperm.xlu0 %306, %v295
        %v308 = vpop.permute.xlu0 %307
        %v310 = vmul.f32 %v298, %v303
        %v311 = vmul.f32 %v299, %v308
        %v312 = vpack.c.bf16 %v311, %v310
        %v314 = vunpack.c.l.b16 %v312
        %v315 = vunpack.c.h.b16 %v312
        %v316 = vpack.c.b16 %v314, %v314
        %v317 = vpack.c.b16 %v315, %v315
        %vm318 = vcmask 1040384
        %vm319 = vcmask 1044484
        %vm320 = vmor %vm318, %vm319
        %v321 = vrot.slane %v316, 7
        %v322 = vrot.slane %v321, 4
        %v323 = vrot.slane %v317, 7
        %v324 = vsel %vm320, %v322, %v323
        %v325 = vrot.slane %v323, 4
        %vm329 = vcmask 519169
        %330 = vst.msk [vmem:[#allocation2] sm:$0xe] %vm329, %v321
        %331 = vst.msk [vmem:[#allocation2 + $0x4] sm:$0xf] %vm286, %v324
        %vm332 = vcmask 516096
        %333 = vst.msk [vmem:[#allocation2 + $0x8] sm:$0x1] %vm332, %v325
        %v334 = vld [vmem:[#allocation2] sm:$0xf]
        %v335 = vld [vmem:[#allocation2 + $0x4] sm:$0xf]
        %v336 = vld [vmem:[#allocation4] sm:$0xf]
        %v337 = vld [vmem:[#allocation4 + $0x4] sm:$0xf]
        %v338 = vld [vmem:[#allocation4 + $0x8] sm:$0xf]
        %v339 = vld [vmem:[#allocation4 + $0xc] sm:$0xf]
        %v340 = vld [vmem:[#allocation4 + $0x10] sm:$0xf]
        %v341 = vld [vmem:[#allocation4 + $0x14] sm:$0xf]
        %v342 = vld [vmem:[#allocation4 + $0x18] sm:$0xf]
        %v343 = vld [vmem:[#allocation4 + $0x1c] sm:$0xf]
        %v344 = vld [vmem:[#allocation2 + $0x8] sm:$0x1]
        %s345 = scalar_lea.vmem [#allocation4], 32
        %v346 = vld [vmem:[%s345] sm:$0xf]
        %v347 = vld [vmem:[%s345 + $0x4] sm:$0xf]
        %v348 = vld [vmem:[%s345 + $0x8] sm:$0xf]
        %v349 = vld [vmem:[%s345 + $0xc] sm:$0xf]
        %v350 = vld [vmem:[%s345 + $0x10] sm:$0xf]
        %v351 = vld [vmem:[%s345 + $0x14] sm:$0xf]
        %v352 = vld [vmem:[%s345 + $0x18] sm:$0xf]
        %v353 = vld [vmem:[%s345 + $0x1c] sm:$0xf]
        %v357 = vunpack.c.l.b16 %v334
        %v358 = vunpack.c.l.b16 %v335
        %v359 = vunpack.c.l.b16 %v344
        %v360 = vpack.c.b16 %v358, %v357
        %v361 = vpack.c.b16 %v359, %v359
        %vm362 = vsmask.f32 7424
        %v364 = vshrl.u32 %v360, 16
        %v366 = vshll.u32 %v360, 16
        %v368 = vrot.slane %v366, 1
        %v369 = vor.u32 %v364, %v368
        %v371 = vshll.u32 %v361, 16
        %v373 = vrot.slane %v371, 1
        %v374 = vsel %vm362, %v369, %v373
        %v383 = vunpack.c.l.b16 %v346
        %v384 = vunpack.c.l.b16 %v347
        %v385 = vunpack.c.l.b16 %v348
        %v386 = vunpack.c.l.b16 %v349
        %v387 = vunpack.c.l.b16 %v350
        %v388 = vunpack.c.l.b16 %v351
        %v389 = vunpack.c.l.b16 %v352
        %v390 = vunpack.c.l.b16 %v353
        %v391 = vpack.c.b16 %v384, %v383
        %v392 = vpack.c.b16 %v386, %v385
        %v393 = vpack.c.b16 %v388, %v387
        %v394 = vpack.c.b16 %v390, %v389
        %vm399 = vcmask 523264
        %v401 = vsel %vm399, %v374, 0
        %403 = vmatprep.subr.bf16.mxu0 0
        %404 = vmatpush1.bf16.msra.mxu0 0
        %405 = vmatprep.subr.bf16.mxu0 0
        %406 = vmatpush1.bf16.msra.mxu0 0
        %407 = vmatprep.subr.bf16.mxu0 0
        %408 = vmatpush1.bf16.msra.mxu0 0
        %409 = vmatprep.subr.bf16.mxu0 0
        %410 = vmatpush1.bf16.msra.mxu0 0
        %411 = vmatprep.subr.bf16.mxu0 0
        %412 = vmatpush1.bf16.msra.mxu0 %v394
        %413 = vmatprep.subr.bf16.mxu0 0
        %414 = vmatpush1.bf16.msra.mxu0 %v393
        %415 = vmatprep.subr.bf16.mxu0 0
        %416 = vmatpush1.bf16.msra.mxu0 %v392
        %417 = vmatprep.subr.bf16.mxu0 0
        %418 = vmatpush1.bf16.msra.mxu0 %v391
        %419 = vmatprep.subr.bf16.mxu0 0
        %420 = vmatpush2.bf16.msra.mxu0 0
        %421 = vmatprep.subr.bf16.mxu0 0
        %422 = vmatpush2.bf16.msra.mxu0 0
        %423 = vmatprep.subr.bf16.mxu0 0
        %424 = vmatpush2.bf16.msra.mxu0 0
        %425 = vmatprep.subr.bf16.mxu0 0
        %426 = vmatpush2.bf16.msra.mxu0 0
        %427 = vmatprep.subr.bf16.mxu0 0
        %428 = vmatpush2.bf16.msra.mxu0 0
        %429 = vmatprep.subr.bf16.mxu0 0
        %430 = vmatpush2.bf16.msra.mxu0 0
        %431 = vmatprep.subr.bf16.mxu0 0
        %432 = vmatpush2.bf16.msra.mxu0 0
        %433 = vmatprep.subr.bf16.mxu0 0
        %434 = vmatpush2.bf16.msra.mxu0 0
        %435 = vmatprep.mubr.bf16.mxu0 0
        %436 = vmatmul.mubr.bf16.gmra.mxu0 %v401
        %v437 = vpop.f32.mrf.mxu0
        %v438 = vadd.f32 0.0, %v437
        %v439 = vpop.f32.mrf.mxu0
        %v440 = vpop.f32.mrf.mxu0
        %v441 = vadd.f32 0.0, %v440
        %v442 = vpop.f32.mrf.mxu0
        %443 = vdwg.mxu0
        %v452 = vunpack.c.l.b16 %v336
        %v453 = vunpack.c.l.b16 %v337
        %v454 = vunpack.c.l.b16 %v338
        %v455 = vunpack.c.l.b16 %v339
        %v456 = vunpack.c.l.b16 %v340
        %v457 = vunpack.c.l.b16 %v341
        %v458 = vunpack.c.l.b16 %v342
        %v459 = vunpack.c.l.b16 %v343
        %v460 = vpack.c.b16 %v453, %v452
        %v461 = vpack.c.b16 %v455, %v454
        %v462 = vpack.c.b16 %v457, %v456
        %v463 = vpack.c.b16 %v459, %v458
        %v468 = vsel %vm399, %v360, 0
        %470 = vmatprep.subr.bf16.mxu0 0
        %471 = vmatpush1.bf16.msra.mxu0 0
        %472 = vmatprep.subr.bf16.mxu0 0
        %473 = vmatpush1.bf16.msra.mxu0 0
        %474 = vmatprep.subr.bf16.mxu0 0
        %475 = vmatpush1.bf16.msra.mxu0 0
        %476 = vmatprep.subr.bf16.mxu0 0
        %477 = vmatpush1.bf16.msra.mxu0 0
        %478 = vmatprep.subr.bf16.mxu0 0
        %479 = vmatpush1.bf16.msra.mxu0 %v463
        %480 = vmatprep.subr.bf16.mxu0 0
        %481 = vmatpush1.bf16.msra.mxu0 %v462
        %482 = vmatprep.subr.bf16.mxu0 0
        %483 = vmatpush1.bf16.msra.mxu0 %v461
        %484 = vmatprep.subr.bf16.mxu0 0
        %485 = vmatpush1.bf16.msra.mxu0 %v460
        %486 = vmatprep.subr.bf16.mxu0 0
        %487 = vmatpush2.bf16.msra.mxu0 0
        %488 = vmatprep.subr.bf16.mxu0 0
        %489 = vmatpush2.bf16.msra.mxu0 0
        %490 = vmatprep.subr.bf16.mxu0 0
        %491 = vmatpush2.bf16.msra.mxu0 0
        %492 = vmatprep.subr.bf16.mxu0 0
        %493 = vmatpush2.bf16.msra.mxu0 0
        %494 = vmatprep.subr.bf16.mxu0 0
        %495 = vmatpush2.bf16.msra.mxu0 0
        %496 = vmatprep.subr.bf16.mxu0 0
        %497 = vmatpush2.bf16.msra.mxu0 0
        %498 = vmatprep.subr.bf16.mxu0 0
        %499 = vmatpush2.bf16.msra.mxu0 0
        %500 = vmatprep.subr.bf16.mxu0 0
        %501 = vmatpush2.bf16.msra.mxu0 0
        %502 = vmatprep.mubr.bf16.mxu0 0
        %503 = vmatmul.mubr.bf16.gmra.mxu0 %v468
        %v504 = vpop.f32.mrf.mxu0
        %v505 = vadd.f32 %v438, %v504
        %v506 = vpop.f32.mrf.mxu0
        %v507 = vpop.f32.mrf.mxu0
        %v508 = vadd.f32 %v441, %v507
        %v509 = vpop.f32.mrf.mxu0
        %510 = vdwg.mxu0
        %v511 = vld [vmem:[#allocation2] sm:$0xe]
        %s512 = scalar_lea.vmem [#allocation4], 64
        %v513 = vld [vmem:[%s512] sm:$0xf]
        %v514 = vld [vmem:[%s512 + $0x4] sm:$0xf]
        %v515 = vld [vmem:[%s512 + $0x8] sm:$0xf]
        %v516 = vld [vmem:[%s512 + $0xc] sm:$0xf]
        %v517 = vld [vmem:[%s512 + $0x10] sm:$0xf]
        %v518 = vld [vmem:[%s512 + $0x14] sm:$0xf]
        %v519 = vld [vmem:[%s512 + $0x18] sm:$0xf]
        %v520 = vld [vmem:[%s512 + $0x1c] sm:$0xf]
        %v522 = vunpack.c.l.b16 %v511
        %v523 = vpack.c.b16 %v358, %v522
        %vm524 = vcmask 1046528
        %v525 = vrot.slane %v523, 1
        %v526 = vrot.slane %v361, 1
        %v527 = vsel %vm524, %v525, %v526
        %v536 = vunpack.c.l.b16 %v513
        %v537 = vunpack.c.l.b16 %v514
        %v538 = vunpack.c.l.b16 %v515
        %v539 = vunpack.c.l.b16 %v516
        %v540 = vunpack.c.l.b16 %v517
        %v541 = vunpack.c.l.b16 %v518
        %v542 = vunpack.c.l.b16 %v519
        %v543 = vunpack.c.l.b16 %v520
        %v544 = vpack.c.b16 %v537, %v536
        %v545 = vpack.c.b16 %v539, %v538
        %v546 = vpack.c.b16 %v541, %v540
        %v547 = vpack.c.b16 %v543, %v542
        %v553 = vsel %vm399, %v527, 0
        %555 = vmatprep.subr.bf16.mxu0 0
        %556 = vmatpush1.bf16.msra.mxu0 0
        %557 = vmatprep.subr.bf16.mxu0 0
        %558 = vmatpush1.bf16.msra.mxu0 0
        %559 = vmatprep.subr.bf16.mxu0 0
        %560 = vmatpush1.bf16.msra.mxu0 0
        %561 = vmatprep.subr.bf16.mxu0 0
        %562 = vmatpush1.bf16.msra.mxu0 0
        %563 = vmatprep.subr.bf16.mxu0 0
        %564 = vmatpush1.bf16.msra.mxu0 %v547
        %565 = vmatprep.subr.bf16.mxu0 0
        %566 = vmatpush1.bf16.msra.mxu0 %v546
        %567 = vmatprep.subr.bf16.mxu0 0
        %568 = vmatpush1.bf16.msra.mxu0 %v545
        %569 = vmatprep.subr.bf16.mxu0 0
        %570 = vmatpush1.bf16.msra.mxu0 %v544
        %571 = vmatprep.subr.bf16.mxu0 0
        %572 = vmatpush2.bf16.msra.mxu0 0
        %573 = vmatprep.subr.bf16.mxu0 0
        %574 = vmatpush2.bf16.msra.mxu0 0
        %575 = vmatprep.subr.bf16.mxu0 0
        %576 = vmatpush2.bf16.msra.mxu0 0
        %577 = vmatprep.subr.bf16.mxu0 0
        %578 = vmatpush2.bf16.msra.mxu0 0
        %579 = vmatprep.subr.bf16.mxu0 0
        %580 = vmatpush2.bf16.msra.mxu0 0
        %581 = vmatprep.subr.bf16.mxu0 0
        %582 = vmatpush2.bf16.msra.mxu0 0
        %583 = vmatprep.subr.bf16.mxu0 0
        %584 = vmatpush2.bf16.msra.mxu0 0
        %585 = vmatprep.subr.bf16.mxu0 0
        %586 = vmatpush2.bf16.msra.mxu0 0
        %587 = vmatprep.mubr.bf16.mxu0 0
        %588 = vmatmul.mubr.bf16.gmra.mxu0 %v553
        %v589 = vpop.f32.mrf.mxu0
        %v590 = vadd.f32 0.0, %v589
        %v591 = vpop.f32.mrf.mxu0
        %v592 = vpop.f32.mrf.mxu0
        %v593 = vadd.f32 0.0, %v592
        %v594 = vpop.f32.mrf.mxu0
        %595 = vdwg.mxu0
        %v596 = vadd.f32 %v505, %v590
        %v597 = vadd.f32 %v508, %v593
        %v598 = vld [vmem:[#allocation2 + $0x8] sm:$0x3]
        %s599 = scalar_lea.vmem [#allocation4], 96
        %v600 = vld [vmem:[%s599] sm:$0xf]
        %v601 = vld [vmem:[%s599 + $0x4] sm:$0xf]
        %v602 = vld [vmem:[%s599 + $0x8] sm:$0xf]
        %v603 = vld [vmem:[%s599 + $0xc] sm:$0xf]
        %v604 = vld [vmem:[%s599 + $0x10] sm:$0xf]
        %v605 = vld [vmem:[%s599 + $0x14] sm:$0xf]
        %v606 = vld [vmem:[%s599 + $0x18] sm:$0xf]
        %v607 = vld [vmem:[%s599 + $0x1c] sm:$0xf]
        %v609 = vunpack.c.l.b16 %v598
        %v610 = vpack.c.b16 %v609, %v609
        %vm611 = vsmask.f32 6400
        %v613 = vshrl.u32 %v523, 16
        %v615 = vrot.slane %v613, 1
        %v616 = vshll.u32 %v523, 16
        %v618 = vrot.slane %v616, 2
        %v619 = vor.u32 %v615, %v618
        %v621 = vshrl.u32 %v610, 16
        %v623 = vrot.slane %v621, 1
        %v624 = vshll.u32 %v610, 16
        %v626 = vrot.slane %v624, 2
        %v627 = vor.u32 %v623, %v626
        %v628 = vsel %vm611, %v619, %v627
        %v637 = vunpack.c.l.b16 %v600
        %v638 = vunpack.c.l.b16 %v601
        %v639 = vunpack.c.l.b16 %v602
        %v640 = vunpack.c.l.b16 %v603
        %v641 = vunpack.c.l.b16 %v604
        %v642 = vunpack.c.l.b16 %v605
        %v643 = vunpack.c.l.b16 %v606
        %v644 = vunpack.c.l.b16 %v607
        %v645 = vpack.c.b16 %v638, %v637
        %v646 = vpack.c.b16 %v640, %v639
        %v647 = vpack.c.b16 %v642, %v641
        %v648 = vpack.c.b16 %v644, %v643
        %v654 = vsel %vm399, %v628, 0
        %656 = vmatprep.subr.bf16.mxu0 0
        %657 = vmatpush1.bf16.msra.mxu0 0
        %658 = vmatprep.subr.bf16.mxu0 0
        %659 = vmatpush1.bf16.msra.mxu0 0
        %660 = vmatprep.subr.bf16.mxu0 0
        %661 = vmatpush1.bf16.msra.mxu0 0
        %662 = vmatprep.subr.bf16.mxu0 0
        %663 = vmatpush1.bf16.msra.mxu0 0
        %664 = vmatprep.subr.bf16.mxu0 0
        %665 = vmatpush1.bf16.msra.mxu0 %v648
        %666 = vmatprep.subr.bf16.mxu0 0
        %667 = vmatpush1.bf16.msra.mxu0 %v647
        %668 = vmatprep.subr.bf16.mxu0 0
        %669 = vmatpush1.bf16.msra.mxu0 %v646
        %670 = vmatprep.subr.bf16.mxu0 0
        %671 = vmatpush1.bf16.msra.mxu0 %v645
        %672 = vmatprep.subr.bf16.mxu0 0
        %673 = vmatpush2.bf16.msra.mxu0 0
        %674 = vmatprep.subr.bf16.mxu0 0
        %675 = vmatpush2.bf16.msra.mxu0 0
        %676 = vmatprep.subr.bf16.mxu0 0
        %677 = vmatpush2.bf16.msra.mxu0 0
        %678 = vmatprep.subr.bf16.mxu0 0
        %679 = vmatpush2.bf16.msra.mxu0 0
        %680 = vmatprep.subr.bf16.mxu0 0
        %681 = vmatpush2.bf16.msra.mxu0 0
        %682 = vmatprep.subr.bf16.mxu0 0
        %683 = vmatpush2.bf16.msra.mxu0 0
        %684 = vmatprep.subr.bf16.mxu0 0
        %685 = vmatpush2.bf16.msra.mxu0 0
        %686 = vmatprep.subr.bf16.mxu0 0
        %687 = vmatpush2.bf16.msra.mxu0 0
        %688 = vmatprep.mubr.bf16.mxu0 0
        %689 = vmatmul.mubr.bf16.gmra.mxu0 %v654
        %v690 = vpop.f32.mrf.mxu0
        %v691 = vadd.f32 0.0, %v690
        %v692 = vpop.f32.mrf.mxu0
        %v693 = vpop.f32.mrf.mxu0
        %v694 = vadd.f32 0.0, %v693
        %v695 = vpop.f32.mrf.mxu0
        %696 = vdwg.mxu0
        %v697 = vadd.f32 %v596, %v691
        %v698 = vadd.f32 %v597, %v694
        %v699 = vld [vmem:[#allocation2] sm:$0xc]
        %s700 = scalar_lea.vmem [#allocation4], 128
        %v701 = vld [vmem:[%s700] sm:$0xf]
        %v702 = vld [vmem:[%s700 + $0x4] sm:$0xf]
        %v703 = vld [vmem:[%s700 + $0x8] sm:$0xf]
        %v704 = vld [vmem:[%s700 + $0xc] sm:$0xf]
        %v705 = vld [vmem:[%s700 + $0x10] sm:$0xf]
        %v706 = vld [vmem:[%s700 + $0x14] sm:$0xf]
        %v707 = vld [vmem:[%s700 + $0x18] sm:$0xf]
        %v708 = vld [vmem:[%s700 + $0x1c] sm:$0xf]
        %v710 = vunpack.c.l.b16 %v699
        %v711 = vpack.c.b16 %v358, %v710
        %vm712 = vcmask 1045504
        %v713 = vrot.slane %v711, 2
        %v714 = vrot.slane %v610, 2
        %v715 = vsel %vm712, %v713, %v714
        %v724 = vunpack.c.l.b16 %v701
        %v725 = vunpack.c.l.b16 %v702
        %v726 = vunpack.c.l.b16 %v703
        %v727 = vunpack.c.l.b16 %v704
        %v728 = vunpack.c.l.b16 %v705
        %v729 = vunpack.c.l.b16 %v706
        %v730 = vunpack.c.l.b16 %v707
        %v731 = vunpack.c.l.b16 %v708
        %v732 = vpack.c.b16 %v725, %v724
        %v733 = vpack.c.b16 %v727, %v726
        %v734 = vpack.c.b16 %v729, %v728
        %v735 = vpack.c.b16 %v731, %v730
        %v741 = vsel %vm399, %v715, 0
        %743 = vmatprep.subr.bf16.mxu0 0
        %744 = vmatpush1.bf16.msra.mxu0 0
        %745 = vmatprep.subr.bf16.mxu0 0
        %746 = vmatpush1.bf16.msra.mxu0 0
        %747 = vmatprep.subr.bf16.mxu0 0
        %748 = vmatpush1.bf16.msra.mxu0 0
        %749 = vmatprep.subr.bf16.mxu0 0
        %750 = vmatpush1.bf16.msra.mxu0 0
        %751 = vmatprep.subr.bf16.mxu0 0
        %752 = vmatpush1.bf16.msra.mxu0 %v735
        %753 = vmatprep.subr.bf16.mxu0 0
        %754 = vmatpush1.bf16.msra.mxu0 %v734
        %755 = vmatprep.subr.bf16.mxu0 0
        %756 = vmatpush1.bf16.msra.mxu0 %v733
        %757 = vmatprep.subr.bf16.mxu0 0
        %758 = vmatpush1.bf16.msra.mxu0 %v732
        %759 = vmatprep.subr.bf16.mxu0 0
        %760 = vmatpush2.bf16.msra.mxu0 0
        %761 = vmatprep.subr.bf16.mxu0 0
        %762 = vmatpush2.bf16.msra.mxu0 0
        %763 = vmatprep.subr.bf16.mxu0 0
        %764 = vmatpush2.bf16.msra.mxu0 0
        %765 = vmatprep.subr.bf16.mxu0 0
        %766 = vmatpush2.bf16.msra.mxu0 0
        %767 = vmatprep.subr.bf16.mxu0 0
        %768 = vmatpush2.bf16.msra.mxu0 0
        %769 = vmatprep.subr.bf16.mxu0 0
        %770 = vmatpush2.bf16.msra.mxu0 0
        %771 = vmatprep.subr.bf16.mxu0 0
        %772 = vmatpush2.bf16.msra.mxu0 0
        %773 = vmatprep.subr.bf16.mxu0 0
        %774 = vmatpush2.bf16.msra.mxu0 0
        %775 = vmatprep.mubr.bf16.mxu0 0
        %776 = vmatmul.mubr.bf16.gmra.mxu0 %v741
        %v777 = vpop.f32.mrf.mxu0
        %v778 = vadd.f32 0.0, %v777
        %v779 = vpop.f32.mrf.mxu0
        %v780 = vpop.f32.mrf.mxu0
        %v781 = vadd.f32 0.0, %v780
        %v782 = vpop.f32.mrf.mxu0
        %783 = vdwg.mxu0
        %v784 = vadd.f32 %v697, %v778
        %v785 = vadd.f32 %v698, %v781
        %v786 = vld [vmem:[%s2] sm:$0x1]
        %v788 = vlaneseq
        %v789 = vshrl.u32 %v788, 7
        %v790 = vsub.s32 0, %v789
        %v791 = vrot.slane %v786, %v790
        %v793 = vadd.f32 %v784, %v791
        %v794 = vadd.f32 %v785, %v791
        %v795 = vsel %vm399, %v793, 0.0
        %796 = vadd.xlane.f32.xlu0 %v795
        %v797 = vpop.xlane.xlu0 %796
        %v798 = vsel %vm399, %v794, 0.0
        %799 = vadd.xlane.f32.xlu0 %v798
        %v800 = vpop.xlane.xlu0 %799
        %v801 = vrcp.pop 64.0
        %v802 = vmul.f32 %v797, %v801
        %v803 = vmul.f32 %v800, %v801
        %v804 = vmul.f32 %v793, %v793
        %v805 = vmul.f32 %v794, %v794
        %v806 = vsel %vm399, %v804, 0.0
        %807 = vadd.xlane.f32.xlu0 %v806
        %v808 = vpop.xlane.xlu0 %807
        %v809 = vsel %vm399, %v805, 0.0
        %810 = vadd.xlane.f32.xlu0 %v809
        %v811 = vpop.xlane.xlu0 %810
        %v812 = vmul.f32 %v808, %v801
        %v813 = vmul.f32 %v811, %v801
        %v814 = vmul.f32 %v802, %v802
        %v815 = vmul.f32 %v803, %v803
        %v816 = vsub.f32 %v812, %v814
        %v817 = vsub.f32 %v813, %v815
        %v818 = vsub.f32 %v793, %v802
        %v819 = vsub.f32 %v794, %v803
        %v820 = vadd.f32 %v816, 1e-05
        %v821 = vadd.f32 %v817, 1e-05
        %v822 = vrsqrt.pop %v820
        %v823 = vrsqrt.pop %v821
        %v824 = vmul.f32 %v818, %v822
        %v825 = vmul.f32 %v819, %v823
        %v826 = vld [vmem:[%s3] sm:$0x1]
        %v828 = vlaneseq
        %v829 = vshrl.u32 %v828, 7
        %v830 = vsub.s32 0, %v829
        %v831 = vrot.slane %v826, %v830
        %v833 = vmul.f32 %v824, %v831
        %v834 = vmul.f32 %v825, %v831
        %v835 = vld [vmem:[%s4] sm:$0x1]
        %v837 = vlaneseq
        %v838 = vshrl.u32 %v837, 7
        %v839 = vsub.s32 0, %v838
        %v840 = vrot.slane %v835, %v839
        %v842 = vadd.f32 %v833, %v840
        %v843 = vadd.f32 %v834, %v840
        %vm844 = vcmp.ge.f32.partialorder %v842, 0.0
        %vm845 = vcmp.ge.f32.partialorder %v843, 0.0
        %v846 = vmul.f32 %v842, 0.2
        %v847 = vmul.f32 %v843, 0.2
        %v848 = vsel %vm844, %v842, %v846
        %v849 = vsel %vm845, %v843, %v847
        %v850 = vmul.f32 %v848, %v303
        %v851 = vmul.f32 %v849, %v308
        %v852 = vpack.c.bf16 %v851, %v850
        %v854 = vunpack.c.l.b16 %v852
        %v855 = vunpack.c.h.b16 %v852
        %v856 = vpack.c.b16 %v854, %v854
        %v857 = vpack.c.b16 %v855, %v855
        %v858 = vrot.slane %v856, 7
        %v859 = vrot.slane %v858, 4
        %v860 = vrot.slane %v857, 7
        %v861 = vsel %vm320, %v859, %v860
        %v862 = vrot.slane %v860, 4
        %866 = vst.msk [vmem:[#allocation3] sm:$0xe] %vm329, %v858
        %867 = vst.msk [vmem:[#allocation3 + $0x4] sm:$0xf] %vm286, %v861
        %868 = vst.msk [vmem:[#allocation3 + $0x8] sm:$0x1] %vm332, %v862
        %v869 = vld [vmem:[#allocation3] sm:$0xf]
        %v870 = vld [vmem:[#allocation3 + $0x4] sm:$0xf]
        %s871 = scalar_lea.vmem [#allocation4], 160
        %v872 = vld [vmem:[%s871] sm:$0xf]
        %v873 = vld [vmem:[%s871 + $0x4] sm:$0xf]
        %v874 = vld [vmem:[%s871 + $0x8] sm:$0xf]
        %v875 = vld [vmem:[%s871 + $0xc] sm:$0xf]
        %v876 = vld [vmem:[%s871 + $0x10] sm:$0xf]
        %v877 = vld [vmem:[%s871 + $0x14] sm:$0xf]
        %v878 = vld [vmem:[%s871 + $0x18] sm:$0xf]
        %v879 = vld [vmem:[%s871 + $0x1c] sm:$0xf]
        %v880 = vld [vmem:[#allocation3 + $0x8] sm:$0x1]
        %s881 = scalar_lea.vmem [#allocation4], 192
        %v882 = vld [vmem:[%s881] sm:$0xf]
        %v883 = vld [vmem:[%s881 + $0x4] sm:$0xf]
        %v884 = vld [vmem:[%s881 + $0x8] sm:$0xf]
        %v885 = vld [vmem:[%s881 + $0xc] sm:$0xf]
        %v886 = vld [vmem:[%s881 + $0x10] sm:$0xf]
        %v887 = vld [vmem:[%s881 + $0x14] sm:$0xf]
        %v888 = vld [vmem:[%s881 + $0x18] sm:$0xf]
        %v889 = vld [vmem:[%s881 + $0x1c] sm:$0xf]
        %v893 = vunpack.c.l.b16 %v869
        %v894 = vunpack.c.l.b16 %v870
        %v895 = vunpack.c.l.b16 %v880
        %v896 = vpack.c.b16 %v894, %v893
        %v897 = vpack.c.b16 %v895, %v895
        %v899 = vshrl.u32 %v896, 16
        %v901 = vshll.u32 %v896, 16
        %v903 = vrot.slane %v901, 1
        %v904 = vor.u32 %v899, %v903
        %v906 = vshll.u32 %v897, 16
        %v908 = vrot.slane %v906, 1
        %v909 = vsel %vm362, %v904, %v908
        %v918 = vunpack.c.l.b16 %v882
        %v919 = vunpack.c.l.b16 %v883
        %v920 = vunpack.c.l.b16 %v884
        %v921 = vunpack.c.l.b16 %v885
        %v922 = vunpack.c.l.b16 %v886
        %v923 = vunpack.c.l.b16 %v887
        %v924 = vunpack.c.l.b16 %v888
        %v925 = vunpack.c.l.b16 %v889
        %v926 = vpack.c.b16 %v919, %v918
        %v927 = vpack.c.b16 %v921, %v920
        %v928 = vpack.c.b16 %v923, %v922
        %v929 = vpack.c.b16 %v925, %v924
        %v935 = vsel %vm399, %v909, 0
        %937 = vmatprep.subr.bf16.mxu0 0
        %938 = vmatpush1.bf16.msra.mxu0 0
        %939 = vmatprep.subr.bf16.mxu0 0
        %940 = vmatpush1.bf16.msra.mxu0 0
        %941 = vmatprep.subr.bf16.mxu0 0
        %942 = vmatpush1.bf16.msra.mxu0 0
        %943 = vmatprep.subr.bf16.mxu0 0
        %944 = vmatpush1.bf16.msra.mxu0 0
        %945 = vmatprep.subr.bf16.mxu0 0
        %946 = vmatpush1.bf16.msra.mxu0 %v929
        %947 = vmatprep.subr.bf16.mxu0 0
        %948 = vmatpush1.bf16.msra.mxu0 %v928
        %949 = vmatprep.subr.bf16.mxu0 0
        %950 = vmatpush1.bf16.msra.mxu0 %v927
        %951 = vmatprep.subr.bf16.mxu0 0
        %952 = vmatpush1.bf16.msra.mxu0 %v926
        %953 = vmatprep.subr.bf16.mxu0 0
        %954 = vmatpush2.bf16.msra.mxu0 0
        %955 = vmatprep.subr.bf16.mxu0 0
        %956 = vmatpush2.bf16.msra.mxu0 0
        %957 = vmatprep.subr.bf16.mxu0 0
        %958 = vmatpush2.bf16.msra.mxu0 0
        %959 = vmatprep.subr.bf16.mxu0 0
        %960 = vmatpush2.bf16.msra.mxu0 0
        %961 = vmatprep.subr.bf16.mxu0 0
        %962 = vmatpush2.bf16.msra.mxu0 0
        %963 = vmatprep.subr.bf16.mxu0 0
        %964 = vmatpush2.bf16.msra.mxu0 0
        %965 = vmatprep.subr.bf16.mxu0 0
        %966 = vmatpush2.bf16.msra.mxu0 0
        %967 = vmatprep.subr.bf16.mxu0 0
        %968 = vmatpush2.bf16.msra.mxu0 0
        %969 = vmatprep.mubr.bf16.mxu0 0
        %970 = vmatmul.mubr.bf16.gmra.mxu0 %v935
        %v971 = vpop.f32.mrf.mxu0
        %v972 = vadd.f32 0.0, %v971
        %v973 = vpop.f32.mrf.mxu0
        %v974 = vpop.f32.mrf.mxu0
        %v975 = vadd.f32 0.0, %v974
        %v976 = vpop.f32.mrf.mxu0
        %977 = vdwg.mxu0
        %v986 = vunpack.c.l.b16 %v872
        %v987 = vunpack.c.l.b16 %v873
        %v988 = vunpack.c.l.b16 %v874
        %v989 = vunpack.c.l.b16 %v875
        %v990 = vunpack.c.l.b16 %v876
        %v991 = vunpack.c.l.b16 %v877
        %v992 = vunpack.c.l.b16 %v878
        %v993 = vunpack.c.l.b16 %v879
        %v994 = vpack.c.b16 %v987, %v986
        %v995 = vpack.c.b16 %v989, %v988
        %v996 = vpack.c.b16 %v991, %v990
        %v997 = vpack.c.b16 %v993, %v992
        %v1002 = vsel %vm399, %v896, 0
        %1004 = vmatprep.subr.bf16.mxu0 0
        %1005 = vmatpush1.bf16.msra.mxu0 0
        %1006 = vmatprep.subr.bf16.mxu0 0
        %1007 = vmatpush1.bf16.msra.mxu0 0
        %1008 = vmatprep.subr.bf16.mxu0 0
        %1009 = vmatpush1.bf16.msra.mxu0 0
        %1010 = vmatprep.subr.bf16.mxu0 0
        %1011 = vmatpush1.bf16.msra.mxu0 0
        %1012 = vmatprep.subr.bf16.mxu0 0
        %1013 = vmatpush1.bf16.msra.mxu0 %v997
        %1014 = vmatprep.subr.bf16.mxu0 0
        %1015 = vmatpush1.bf16.msra.mxu0 %v996
        %1016 = vmatprep.subr.bf16.mxu0 0
        %1017 = vmatpush1.bf16.msra.mxu0 %v995
        %1018 = vmatprep.subr.bf16.mxu0 0
        %1019 = vmatpush1.bf16.msra.mxu0 %v994
        %1020 = vmatprep.subr.bf16.mxu0 0
        %1021 = vmatpush2.bf16.msra.mxu0 0
        %1022 = vmatprep.subr.bf16.mxu0 0
        %1023 = vmatpush2.bf16.msra.mxu0 0
        %1024 = vmatprep.subr.bf16.mxu0 0
        %1025 = vmatpush2.bf16.msra.mxu0 0
        %1026 = vmatprep.subr.bf16.mxu0 0
        %1027 = vmatpush2.bf16.msra.mxu0 0
        %1028 = vmatprep.subr.bf16.mxu0 0
        %1029 = vmatpush2.bf16.msra.mxu0 0
        %1030 = vmatprep.subr.bf16.mxu0 0
        %1031 = vmatpush2.bf16.msra.mxu0 0
        %1032 = vmatprep.subr.bf16.mxu0 0
        %1033 = vmatpush2.bf16.msra.mxu0 0
        %1034 = vmatprep.subr.bf16.mxu0 0
        %1035 = vmatpush2.bf16.msra.mxu0 0
        %1036 = vmatprep.mubr.bf16.mxu0 0
        %1037 = vmatmul.mubr.bf16.gmra.mxu0 %v1002
        %v1038 = vpop.f32.mrf.mxu0
        %v1039 = vadd.f32 %v972, %v1038
        %v1040 = vpop.f32.mrf.mxu0
        %v1041 = vpop.f32.mrf.mxu0
        %v1042 = vadd.f32 %v975, %v1041
        %v1043 = vpop.f32.mrf.mxu0
        %1044 = vdwg.mxu0
        %v1045 = vld [vmem:[#allocation3] sm:$0xe]
        %s1046 = scalar_lea.vmem [#allocation4], 224
        %v1047 = vld [vmem:[%s1046] sm:$0xf]
        %v1048 = vld [vmem:[%s1046 + $0x4] sm:$0xf]
        %v1049 = vld [vmem:[%s1046 + $0x8] sm:$0xf]
        %v1050 = vld [vmem:[%s1046 + $0xc] sm:$0xf]
        %v1051 = vld [vmem:[%s1046 + $0x10] sm:$0xf]
        %v1052 = vld [vmem:[%s1046 + $0x14] sm:$0xf]
        %v1053 = vld [vmem:[%s1046 + $0x18] sm:$0xf]
        %v1054 = vld [vmem:[%s1046 + $0x1c] sm:$0xf]
        %v1056 = vunpack.c.l.b16 %v1045
        %v1057 = vpack.c.b16 %v894, %v1056
        %v1058 = vrot.slane %v1057, 1
        %v1059 = vrot.slane %v897, 1
        %v1060 = vsel %vm524, %v1058, %v1059
        %v1069 = vunpack.c.l.b16 %v1047
        %v1070 = vunpack.c.l.b16 %v1048
        %v1071 = vunpack.c.l.b16 %v1049
        %v1072 = vunpack.c.l.b16 %v1050
        %v1073 = vunpack.c.l.b16 %v1051
        %v1074 = vunpack.c.l.b16 %v1052
        %v1075 = vunpack.c.l.b16 %v1053
        %v1076 = vunpack.c.l.b16 %v1054
        %v1077 = vpack.c.b16 %v1070, %v1069
        %v1078 = vpack.c.b16 %v1072, %v1071
        %v1079 = vpack.c.b16 %v1074, %v1073
        %v1080 = vpack.c.b16 %v1076, %v1075
        %v1086 = vsel %vm399, %v1060, 0
        %1088 = vmatprep.subr.bf16.mxu0 0
        %1089 = vmatpush1.bf16.msra.mxu0 0
        %1090 = vmatprep.subr.bf16.mxu0 0
        %1091 = vmatpush1.bf16.msra.mxu0 0
        %1092 = vmatprep.subr.bf16.mxu0 0
        %1093 = vmatpush1.bf16.msra.mxu0 0
        %1094 = vmatprep.subr.bf16.mxu0 0
        %1095 = vmatpush1.bf16.msra.mxu0 0
        %1096 = vmatprep.subr.bf16.mxu0 0
        %1097 = vmatpush1.bf16.msra.mxu0 %v1080
        %1098 = vmatprep.subr.bf16.mxu0 0
        %1099 = vmatpush1.bf16.msra.mxu0 %v1079
        %1100 = vmatprep.subr.bf16.mxu0 0
        %1101 = vmatpush1.bf16.msra.mxu0 %v1078
        %1102 = vmatprep.subr.bf16.mxu0 0
        %1103 = vmatpush1.bf16.msra.mxu0 %v1077
        %1104 = vmatprep.subr.bf16.mxu0 0
        %1105 = vmatpush2.bf16.msra.mxu0 0
        %1106 = vmatprep.subr.bf16.mxu0 0
        %1107 = vmatpush2.bf16.msra.mxu0 0
        %1108 = vmatprep.subr.bf16.mxu0 0
        %1109 = vmatpush2.bf16.msra.mxu0 0
        %1110 = vmatprep.subr.bf16.mxu0 0
        %1111 = vmatpush2.bf16.msra.mxu0 0
        %1112 = vmatprep.subr.bf16.mxu0 0
        %1113 = vmatpush2.bf16.msra.mxu0 0
        %1114 = vmatprep.subr.bf16.mxu0 0
        %1115 = vmatpush2.bf16.msra.mxu0 0
        %1116 = vmatprep.subr.bf16.mxu0 0
        %1117 = vmatpush2.bf16.msra.mxu0 0
        %1118 = vmatprep.subr.bf16.mxu0 0
        %1119 = vmatpush2.bf16.msra.mxu0 0
        %1120 = vmatprep.mubr.bf16.mxu0 0
        %1121 = vmatmul.mubr.bf16.gmra.mxu0 %v1086
        %v1122 = vpop.f32.mrf.mxu0
        %v1123 = vadd.f32 0.0, %v1122
        %v1124 = vpop.f32.mrf.mxu0
        %v1125 = vpop.f32.mrf.mxu0
        %v1126 = vadd.f32 0.0, %v1125
        %v1127 = vpop.f32.mrf.mxu0
        %1128 = vdwg.mxu0
        %v1129 = vadd.f32 %v1039, %v1123
        %v1130 = vadd.f32 %v1042, %v1126
        %v1131 = vld [vmem:[#allocation3 + $0x8] sm:$0x3]
        %s1132 = scalar_lea.vmem [#allocation4], 256
        %v1133 = vld [vmem:[%s1132] sm:$0xf]
        %v1134 = vld [vmem:[%s1132 + $0x4] sm:$0xf]
        %v1135 = vld [vmem:[%s1132 + $0x8] sm:$0xf]
        %v1136 = vld [vmem:[%s1132 + $0xc] sm:$0xf]
        %v1137 = vld [vmem:[%s1132 + $0x10] sm:$0xf]
        %v1138 = vld [vmem:[%s1132 + $0x14] sm:$0xf]
        %v1139 = vld [vmem:[%s1132 + $0x18] sm:$0xf]
        %v1140 = vld [vmem:[%s1132 + $0x1c] sm:$0xf]
        %v1142 = vunpack.c.l.b16 %v1131
        %v1143 = vpack.c.b16 %v1142, %v1142
        %v1145 = vshrl.u32 %v1057, 16
        %v1147 = vrot.slane %v1145, 1
        %v1148 = vshll.u32 %v1057, 16
        %v1150 = vrot.slane %v1148, 2
        %v1151 = vor.u32 %v1147, %v1150
        %v1153 = vshrl.u32 %v1143, 16
        %v1155 = vrot.slane %v1153, 1
        %v1156 = vshll.u32 %v1143, 16
        %v1158 = vrot.slane %v1156, 2
        %v1159 = vor.u32 %v1155, %v1158
        %v1160 = vsel %vm611, %v1151, %v1159
        %v1169 = vunpack.c.l.b16 %v1133
        %v1170 = vunpack.c.l.b16 %v1134
        %v1171 = vunpack.c.l.b16 %v1135
        %v1172 = vunpack.c.l.b16 %v1136
        %v1173 = vunpack.c.l.b16 %v1137
        %v1174 = vunpack.c.l.b16 %v1138
        %v1175 = vunpack.c.l.b16 %v1139
        %v1176 = vunpack.c.l.b16 %v1140
        %v1177 = vpack.c.b16 %v1170, %v1169
        %v1178 = vpack.c.b16 %v1172, %v1171
        %v1179 = vpack.c.b16 %v1174, %v1173
        %v1180 = vpack.c.b16 %v1176, %v1175
        %v1186 = vsel %vm399, %v1160, 0
        %1188 = vmatprep.subr.bf16.mxu0 0
        %1189 = vmatpush1.bf16.msra.mxu0 0
        %1190 = vmatprep.subr.bf16.mxu0 0
        %1191 = vmatpush1.bf16.msra.mxu0 0
        %1192 = vmatprep.subr.bf16.mxu0 0
        %1193 = vmatpush1.bf16.msra.mxu0 0
        %1194 = vmatprep.subr.bf16.mxu0 0
        %1195 = vmatpush1.bf16.msra.mxu0 0
        %1196 = vmatprep.subr.bf16.mxu0 0
        %1197 = vmatpush1.bf16.msra.mxu0 %v1180
        %1198 = vmatprep.subr.bf16.mxu0 0
        %1199 = vmatpush1.bf16.msra.mxu0 %v1179
        %1200 = vmatprep.subr.bf16.mxu0 0
        %1201 = vmatpush1.bf16.msra.mxu0 %v1178
        %1202 = vmatprep.subr.bf16.mxu0 0
        %1203 = vmatpush1.bf16.msra.mxu0 %v1177
        %1204 = vmatprep.subr.bf16.mxu0 0
        %1205 = vmatpush2.bf16.msra.mxu0 0
        %1206 = vmatprep.subr.bf16.mxu0 0
        %1207 = vmatpush2.bf16.msra.mxu0 0
        %1208 = vmatprep.subr.bf16.mxu0 0
        %1209 = vmatpush2.bf16.msra.mxu0 0
        %1210 = vmatprep.subr.bf16.mxu0 0
        %1211 = vmatpush2.bf16.msra.mxu0 0
        %1212 = vmatprep.subr.bf16.mxu0 0
        %1213 = vmatpush2.bf16.msra.mxu0 0
        %1214 = vmatprep.subr.bf16.mxu0 0
        %1215 = vmatpush2.bf16.msra.mxu0 0
        %1216 = vmatprep.subr.bf16.mxu0 0
        %1217 = vmatpush2.bf16.msra.mxu0 0
        %1218 = vmatprep.subr.bf16.mxu0 0
        %1219 = vmatpush2.bf16.msra.mxu0 0
        %1220 = vmatprep.mubr.bf16.mxu0 0
        %1221 = vmatmul.mubr.bf16.gmra.mxu0 %v1186
        %v1222 = vpop.f32.mrf.mxu0
        %v1223 = vadd.f32 0.0, %v1222
        %v1224 = vpop.f32.mrf.mxu0
        %v1225 = vpop.f32.mrf.mxu0
        %v1226 = vadd.f32 0.0, %v1225
        %v1227 = vpop.f32.mrf.mxu0
        %1228 = vdwg.mxu0
        %v1229 = vadd.f32 %v1129, %v1223
        %v1230 = vadd.f32 %v1130, %v1226
        %v1231 = vld [vmem:[#allocation3] sm:$0xc]
        %s1232 = scalar_lea.vmem [#allocation4], 288
        %v1233 = vld [vmem:[%s1232] sm:$0xf]
        %v1234 = vld [vmem:[%s1232 + $0x4] sm:$0xf]
        %v1235 = vld [vmem:[%s1232 + $0x8] sm:$0xf]
        %v1236 = vld [vmem:[%s1232 + $0xc] sm:$0xf]
        %v1237 = vld [vmem:[%s1232 + $0x10] sm:$0xf]
        %v1238 = vld [vmem:[%s1232 + $0x14] sm:$0xf]
        %v1239 = vld [vmem:[%s1232 + $0x18] sm:$0xf]
        %v1240 = vld [vmem:[%s1232 + $0x1c] sm:$0xf]
        %v1242 = vunpack.c.l.b16 %v1231
        %v1243 = vpack.c.b16 %v894, %v1242
        %v1244 = vrot.slane %v1243, 2
        %v1245 = vrot.slane %v1143, 2
        %v1246 = vsel %vm712, %v1244, %v1245
        %v1255 = vunpack.c.l.b16 %v1233
        %v1256 = vunpack.c.l.b16 %v1234
        %v1257 = vunpack.c.l.b16 %v1235
        %v1258 = vunpack.c.l.b16 %v1236
        %v1259 = vunpack.c.l.b16 %v1237
        %v1260 = vunpack.c.l.b16 %v1238
        %v1261 = vunpack.c.l.b16 %v1239
        %v1262 = vunpack.c.l.b16 %v1240
        %v1263 = vpack.c.b16 %v1256, %v1255
        %v1264 = vpack.c.b16 %v1258, %v1257
        %v1265 = vpack.c.b16 %v1260, %v1259
        %v1266 = vpack.c.b16 %v1262, %v1261
        %v1272 = vsel %vm399, %v1246, 0
        %1274 = vmatprep.subr.bf16.mxu0 0
        %1275 = vmatpush1.bf16.msra.mxu0 0
        %1276 = vmatprep.subr.bf16.mxu0 0
        %1277 = vmatpush1.bf16.msra.mxu0 0
        %1278 = vmatprep.subr.bf16.mxu0 0
        %1279 = vmatpush1.bf16.msra.mxu0 0
        %1280 = vmatprep.subr.bf16.mxu0 0
        %1281 = vmatpush1.bf16.msra.mxu0 0
        %1282 = vmatprep.subr.bf16.mxu0 0
        %1283 = vmatpush1.bf16.msra.mxu0 %v1266
        %1284 = vmatprep.subr.bf16.mxu0 0
        %1285 = vmatpush1.bf16.msra.mxu0 %v1265
        %1286 = vmatprep.subr.bf16.mxu0 0
        %1287 = vmatpush1.bf16.msra.mxu0 %v1264
        %1288 = vmatprep.subr.bf16.mxu0 0
        %1289 = vmatpush1.bf16.msra.mxu0 %v1263
        %1290 = vmatprep.subr.bf16.mxu0 0
        %1291 = vmatpush2.bf16.msra.mxu0 0
        %1292 = vmatprep.subr.bf16.mxu0 0
        %1293 = vmatpush2.bf16.msra.mxu0 0
        %1294 = vmatprep.subr.bf16.mxu0 0
        %1295 = vmatpush2.bf16.msra.mxu0 0
        %1296 = vmatprep.subr.bf16.mxu0 0
        %1297 = vmatpush2.bf16.msra.mxu0 0
        %1298 = vmatprep.subr.bf16.mxu0 0
        %1299 = vmatpush2.bf16.msra.mxu0 0
        %1300 = vmatprep.subr.bf16.mxu0 0
        %1301 = vmatpush2.bf16.msra.mxu0 0
        %1302 = vmatprep.subr.bf16.mxu0 0
        %1303 = vmatpush2.bf16.msra.mxu0 0
        %1304 = vmatprep.subr.bf16.mxu0 0
        %1305 = vmatpush2.bf16.msra.mxu0 0
        %1306 = vmatprep.mubr.bf16.mxu0 0
        %1307 = vmatmul.mubr.bf16.gmra.mxu0 %v1272
        %v1308 = vpop.f32.mrf.mxu0
        %v1309 = vadd.f32 0.0, %v1308
        %v1310 = vpop.f32.mrf.mxu0
        %v1311 = vpop.f32.mrf.mxu0
        %v1312 = vadd.f32 0.0, %v1311
        %v1313 = vpop.f32.mrf.mxu0
        %1314 = vdwg.mxu0
        %v1315 = vadd.f32 %v1229, %v1309
        %v1316 = vadd.f32 %v1230, %v1312
        %s1317 = scalar_lea.vmem %s2, 1
        %v1318 = vld [vmem:[%s1317] sm:$0x1]
        %v1320 = vlaneseq
        %v1321 = vshrl.u32 %v1320, 7
        %v1322 = vsub.s32 0, %v1321
        %v1323 = vrot.slane %v1318, %v1322
        %v1325 = vadd.f32 %v1315, %v1323
        %v1326 = vadd.f32 %v1316, %v1323
        %v1327 = vsel %vm399, %v1325, 0.0
        %1328 = vadd.xlane.f32.xlu0 %v1327
        %v1329 = vpop.xlane.xlu0 %1328
        %v1330 = vsel %vm399, %v1326, 0.0
        %1331 = vadd.xlane.f32.xlu0 %v1330
        %v1332 = vpop.xlane.xlu0 %1331
        %v1333 = vmul.f32 %v1329, %v801
        %v1334 = vmul.f32 %v1332, %v801
        %v1335 = vmul.f32 %v1325, %v1325
        %v1336 = vmul.f32 %v1326, %v1326
        %v1337 = vsel %vm399, %v1335, 0.0
        %1338 = vadd.xlane.f32.xlu0 %v1337
        %v1339 = vpop.xlane.xlu0 %1338
        %v1340 = vsel %vm399, %v1336, 0.0
        %1341 = vadd.xlane.f32.xlu0 %v1340
        %v1342 = vpop.xlane.xlu0 %1341
        %v1343 = vmul.f32 %v1339, %v801
        %v1344 = vmul.f32 %v1342, %v801
        %v1345 = vmul.f32 %v1333, %v1333
        %v1346 = vmul.f32 %v1334, %v1334
        %v1347 = vsub.f32 %v1343, %v1345
        %v1348 = vsub.f32 %v1344, %v1346
        %v1349 = vsub.f32 %v1325, %v1333
        %v1350 = vsub.f32 %v1326, %v1334
        %v1351 = vadd.f32 %v1347, 1e-05
        %v1352 = vadd.f32 %v1348, 1e-05
        %v1353 = vrsqrt.pop %v1351
        %v1354 = vrsqrt.pop %v1352
        %v1355 = vmul.f32 %v1349, %v1353
        %v1356 = vmul.f32 %v1350, %v1354
        %s1357 = scalar_lea.vmem %s3, 1
        %v1358 = vld [vmem:[%s1357] sm:$0x1]
        %v1360 = vlaneseq
        %v1361 = vshrl.u32 %v1360, 7
        %v1362 = vsub.s32 0, %v1361
        %v1363 = vrot.slane %v1358, %v1362
        %v1365 = vmul.f32 %v1355, %v1363
        %v1366 = vmul.f32 %v1356, %v1363
        %s1367 = scalar_lea.vmem %s4, 1
        %v1368 = vld [vmem:[%s1367] sm:$0x1]
        %v1370 = vlaneseq
        %v1371 = vshrl.u32 %v1370, 7
        %v1372 = vsub.s32 0, %v1371
        %v1373 = vrot.slane %v1368, %v1372
        %v1375 = vadd.f32 %v1365, %v1373
        %v1376 = vadd.f32 %v1366, %v1373
        %vm1377 = vcmp.ge.f32.partialorder %v1375, 0.0
        %vm1378 = vcmp.ge.f32.partialorder %v1376, 0.0
        %v1379 = vmul.f32 %v1375, 0.2
        %v1380 = vmul.f32 %v1376, 0.2
        %v1381 = vsel %vm1377, %v1375, %v1379
        %v1382 = vsel %vm1378, %v1376, %v1380
        %v1383 = vmul.f32 %v1381, %v303
        %v1384 = vmul.f32 %v1382, %v308
        %v1385 = vpack.c.bf16 %v1384, %v1383
        %v1387 = vunpack.c.l.b16 %v1385
        %v1388 = vunpack.c.h.b16 %v1385
        %v1389 = vpack.c.b16 %v1387, %v1387
        %v1390 = vpack.c.b16 %v1388, %v1388
        %v1391 = vrot.slane %v1389, 7
        %v1392 = vrot.slane %v1391, 4
        %v1393 = vrot.slane %v1390, 7
        %v1394 = vsel %vm320, %v1392, %v1393
        %v1395 = vrot.slane %v1393, 4
        %1399 = vst.msk [vmem:[#allocation2] sm:$0xe] %vm329, %v1391
        %1400 = vst.msk [vmem:[#allocation2 + $0x4] sm:$0xf] %vm286, %v1394
        %1401 = vst.msk [vmem:[#allocation2 + $0x8] sm:$0x1] %vm332, %v1395
        %v1402 = vld [vmem:[#allocation2] sm:$0xf]
        %v1403 = vld [vmem:[#allocation2 + $0x4] sm:$0xf]
        %s1404 = scalar_lea.vmem [#allocation4], 320
        %v1405 = vld [vmem:[%s1404] sm:$0xf]
        %v1406 = vld [vmem:[%s1404 + $0x4] sm:$0xf]
        %v1407 = vld [vmem:[%s1404 + $0x8] sm:$0xf]
        %v1408 = vld [vmem:[%s1404 + $0xc] sm:$0xf]
        %v1409 = vld [vmem:[%s1404 + $0x10] sm:$0xf]
        %v1410 = vld [vmem:[%s1404 + $0x14] sm:$0xf]
        %v1411 = vld [vmem:[%s1404 + $0x18] sm:$0xf]
        %v1412 = vld [vmem:[%s1404 + $0x1c] sm:$0xf]
        %v1413 = vld [vmem:[#allocation2 + $0x8] sm:$0x1]
        %s1414 = scalar_lea.vmem [#allocation4], 352
        %v1415 = vld [vmem:[%s1414] sm:$0xf]
        %v1416 = vld [vmem:[%s1414 + $0x4] sm:$0xf]
        %v1417 = vld [vmem:[%s1414 + $0x8] sm:$0xf]
        %v1418 = vld [vmem:[%s1414 + $0xc] sm:$0xf]
        %v1419 = vld [vmem:[%s1414 + $0x10] sm:$0xf]
        %v1420 = vld [vmem:[%s1414 + $0x14] sm:$0xf]
        %v1421 = vld [vmem:[%s1414 + $0x18] sm:$0xf]
        %v1422 = vld [vmem:[%s1414 + $0x1c] sm:$0xf]
        %v1426 = vunpack.c.l.b16 %v1402
        %v1427 = vunpack.c.l.b16 %v1403
        %v1428 = vunpack.c.l.b16 %v1413
        %v1429 = vpack.c.b16 %v1427, %v1426
        %v1430 = vpack.c.b16 %v1428, %v1428
        %v1432 = vshrl.u32 %v1429, 16
        %v1434 = vshll.u32 %v1429, 16
        %v1436 = vrot.slane %v1434, 1
        %v1437 = vor.u32 %v1432, %v1436
        %v1439 = vshll.u32 %v1430, 16
        %v1441 = vrot.slane %v1439, 1
        %v1442 = vsel %vm362, %v1437, %v1441
        %v1451 = vunpack.c.l.b16 %v1415
        %v1452 = vunpack.c.l.b16 %v1416
        %v1453 = vunpack.c.l.b16 %v1417
        %v1454 = vunpack.c.l.b16 %v1418
        %v1455 = vunpack.c.l.b16 %v1419
        %v1456 = vunpack.c.l.b16 %v1420
        %v1457 = vunpack.c.l.b16 %v1421
        %v1458 = vunpack.c.l.b16 %v1422
        %v1459 = vpack.c.b16 %v1452, %v1451
        %v1460 = vpack.c.b16 %v1454, %v1453
        %v1461 = vpack.c.b16 %v1456, %v1455
        %v1462 = vpack.c.b16 %v1458, %v1457
        %v1468 = vsel %vm399, %v1442, 0
        %1470 = vmatprep.subr.bf16.mxu0 0
        %1471 = vmatpush1.bf16.msra.mxu0 0
        %1472 = vmatprep.subr.bf16.mxu0 0
        %1473 = vmatpush1.bf16.msra.mxu0 0
        %1474 = vmatprep.subr.bf16.mxu0 0
        %1475 = vmatpush1.bf16.msra.mxu0 0
        %1476 = vmatprep.subr.bf16.mxu0 0
        %1477 = vmatpush1.bf16.msra.mxu0 0
        %1478 = vmatprep.subr.bf16.mxu0 0
        %1479 = vmatpush1.bf16.msra.mxu0 %v1462
        %1480 = vmatprep.subr.bf16.mxu0 0
        %1481 = vmatpush1.bf16.msra.mxu0 %v1461
        %1482 = vmatprep.subr.bf16.mxu0 0
        %1483 = vmatpush1.bf16.msra.mxu0 %v1460
        %1484 = vmatprep.subr.bf16.mxu0 0
        %1485 = vmatpush1.bf16.msra.mxu0 %v1459
        %1486 = vmatprep.subr.bf16.mxu0 0
        %1487 = vmatpush2.bf16.msra.mxu0 0
        %1488 = vmatprep.subr.bf16.mxu0 0
        %1489 = vmatpush2.bf16.msra.mxu0 0
        %1490 = vmatprep.subr.bf16.mxu0 0
        %1491 = vmatpush2.bf16.msra.mxu0 0
        %1492 = vmatprep.subr.bf16.mxu0 0
        %1493 = vmatpush2.bf16.msra.mxu0 0
        %1494 = vmatprep.subr.bf16.mxu0 0
        %1495 = vmatpush2.bf16.msra.mxu0 0
        %1496 = vmatprep.subr.bf16.mxu0 0
        %1497 = vmatpush2.bf16.msra.mxu0 0
        %1498 = vmatprep.subr.bf16.mxu0 0
        %1499 = vmatpush2.bf16.msra.mxu0 0
        %1500 = vmatprep.subr.bf16.mxu0 0
        %1501 = vmatpush2.bf16.msra.mxu0 0
        %1502 = vmatprep.mubr.bf16.mxu0 0
        %1503 = vmatmul.mubr.bf16.gmra.mxu0 %v1468
        %v1504 = vpop.f32.mrf.mxu0
        %v1505 = vadd.f32 0.0, %v1504
        %v1506 = vpop.f32.mrf.mxu0
        %v1507 = vpop.f32.mrf.mxu0
        %v1508 = vadd.f32 0.0, %v1507
        %v1509 = vpop.f32.mrf.mxu0
        %1510 = vdwg.mxu0
        %v1519 = vunpack.c.l.b16 %v1405
        %v1520 = vunpack.c.l.b16 %v1406
        %v1521 = vunpack.c.l.b16 %v1407
        %v1522 = vunpack.c.l.b16 %v1408
        %v1523 = vunpack.c.l.b16 %v1409
        %v1524 = vunpack.c.l.b16 %v1410
        %v1525 = vunpack.c.l.b16 %v1411
        %v1526 = vunpack.c.l.b16 %v1412
        %v1527 = vpack.c.b16 %v1520, %v1519
        %v1528 = vpack.c.b16 %v1522, %v1521
        %v1529 = vpack.c.b16 %v1524, %v1523
        %v1530 = vpack.c.b16 %v1526, %v1525
        %v1535 = vsel %vm399, %v1429, 0
        %1537 = vmatprep.subr.bf16.mxu0 0
        %1538 = vmatpush1.bf16.msra.mxu0 0
        %1539 = vmatprep.subr.bf16.mxu0 0
        %1540 = vmatpush1.bf16.msra.mxu0 0
        %1541 = vmatprep.subr.bf16.mxu0 0
        %1542 = vmatpush1.bf16.msra.mxu0 0
        %1543 = vmatprep.subr.bf16.mxu0 0
        %1544 = vmatpush1.bf16.msra.mxu0 0
        %1545 = vmatprep.subr.bf16.mxu0 0
        %1546 = vmatpush1.bf16.msra.mxu0 %v1530
        %1547 = vmatprep.subr.bf16.mxu0 0
        %1548 = vmatpush1.bf16.msra.mxu0 %v1529
        %1549 = vmatprep.subr.bf16.mxu0 0
        %1550 = vmatpush1.bf16.msra.mxu0 %v1528
        %1551 = vmatprep.subr.bf16.mxu0 0
        %1552 = vmatpush1.bf16.msra.mxu0 %v1527
        %1553 = vmatprep.subr.bf16.mxu0 0
        %1554 = vmatpush2.bf16.msra.mxu0 0
        %1555 = vmatprep.subr.bf16.mxu0 0
        %1556 = vmatpush2.bf16.msra.mxu0 0
        %1557 = vmatprep.subr.bf16.mxu0 0
        %1558 = vmatpush2.bf16.msra.mxu0 0
        %1559 = vmatprep.subr.bf16.mxu0 0
        %1560 = vmatpush2.bf16.msra.mxu0 0
        %1561 = vmatprep.subr.bf16.mxu0 0
        %1562 = vmatpush2.bf16.msra.mxu0 0
        %1563 = vmatprep.subr.bf16.mxu0 0
        %1564 = vmatpush2.bf16.msra.mxu0 0
        %1565 = vmatprep.subr.bf16.mxu0 0
        %1566 = vmatpush2.bf16.msra.mxu0 0
        %1567 = vmatprep.subr.bf16.mxu0 0
        %1568 = vmatpush2.bf16.msra.mxu0 0
        %1569 = vmatprep.mubr.bf16.mxu0 0
        %1570 = vmatmul.mubr.bf16.gmra.mxu0 %v1535
        %v1571 = vpop.f32.mrf.mxu0
        %v1572 = vadd.f32 %v1505, %v1571
        %v1573 = vpop.f32.mrf.mxu0
        %v1574 = vpop.f32.mrf.mxu0
        %v1575 = vadd.f32 %v1508, %v1574
        %v1576 = vpop.f32.mrf.mxu0
        %1577 = vdwg.mxu0
        %v1578 = vld [vmem:[#allocation2] sm:$0xe]
        %s1579 = scalar_lea.vmem [#allocation4], 384
        %v1580 = vld [vmem:[%s1579] sm:$0xf]
        %v1581 = vld [vmem:[%s1579 + $0x4] sm:$0xf]
        %v1582 = vld [vmem:[%s1579 + $0x8] sm:$0xf]
        %v1583 = vld [vmem:[%s1579 + $0xc] sm:$0xf]
        %v1584 = vld [vmem:[%s1579 + $0x10] sm:$0xf]
        %v1585 = vld [vmem:[%s1579 + $0x14] sm:$0xf]
        %v1586 = vld [vmem:[%s1579 + $0x18] sm:$0xf]
        %v1587 = vld [vmem:[%s1579 + $0x1c] sm:$0xf]
        %v1589 = vunpack.c.l.b16 %v1578
        %v1590 = vpack.c.b16 %v1427, %v1589
        %v1591 = vrot.slane %v1590, 1
        %v1592 = vrot.slane %v1430, 1
        %v1593 = vsel %vm524, %v1591, %v1592
        %v1602 = vunpack.c.l.b16 %v1580
        %v1603 = vunpack.c.l.b16 %v1581
        %v1604 = vunpack.c.l.b16 %v1582
        %v1605 = vunpack.c.l.b16 %v1583
        %v1606 = vunpack.c.l.b16 %v1584
        %v1607 = vunpack.c.l.b16 %v1585
        %v1608 = vunpack.c.l.b16 %v1586
        %v1609 = vunpack.c.l.b16 %v1587
        %v1610 = vpack.c.b16 %v1603, %v1602
        %v1611 = vpack.c.b16 %v1605, %v1604
        %v1612 = vpack.c.b16 %v1607, %v1606
        %v1613 = vpack.c.b16 %v1609, %v1608
        %v1619 = vsel %vm399, %v1593, 0
        %1621 = vmatprep.subr.bf16.mxu0 0
        %1622 = vmatpush1.bf16.msra.mxu0 0
        %1623 = vmatprep.subr.bf16.mxu0 0
        %1624 = vmatpush1.bf16.msra.mxu0 0
        %1625 = vmatprep.subr.bf16.mxu0 0
        %1626 = vmatpush1.bf16.msra.mxu0 0
        %1627 = vmatprep.subr.bf16.mxu0 0
        %1628 = vmatpush1.bf16.msra.mxu0 0
        %1629 = vmatprep.subr.bf16.mxu0 0
        %1630 = vmatpush1.bf16.msra.mxu0 %v1613
        %1631 = vmatprep.subr.bf16.mxu0 0
        %1632 = vmatpush1.bf16.msra.mxu0 %v1612
        %1633 = vmatprep.subr.bf16.mxu0 0
        %1634 = vmatpush1.bf16.msra.mxu0 %v1611
        %1635 = vmatprep.subr.bf16.mxu0 0
        %1636 = vmatpush1.bf16.msra.mxu0 %v1610
        %1637 = vmatprep.subr.bf16.mxu0 0
        %1638 = vmatpush2.bf16.msra.mxu0 0
        %1639 = vmatprep.subr.bf16.mxu0 0
        %1640 = vmatpush2.bf16.msra.mxu0 0
        %1641 = vmatprep.subr.bf16.mxu0 0
        %1642 = vmatpush2.bf16.msra.mxu0 0
        %1643 = vmatprep.subr.bf16.mxu0 0
        %1644 = vmatpush2.bf16.msra.mxu0 0
        %1645 = vmatprep.subr.bf16.mxu0 0
        %1646 = vmatpush2.bf16.msra.mxu0 0
        %1647 = vmatprep.subr.bf16.mxu0 0
        %1648 = vmatpush2.bf16.msra.mxu0 0
        %1649 = vmatprep.subr.bf16.mxu0 0
        %1650 = vmatpush2.bf16.msra.mxu0 0
        %1651 = vmatprep.subr.bf16.mxu0 0
        %1652 = vmatpush2.bf16.msra.mxu0 0
        %1653 = vmatprep.mubr.bf16.mxu0 0
        %1654 = vmatmul.mubr.bf16.gmra.mxu0 %v1619
        %v1655 = vpop.f32.mrf.mxu0
        %v1656 = vadd.f32 0.0, %v1655
        %v1657 = vpop.f32.mrf.mxu0
        %v1658 = vpop.f32.mrf.mxu0
        %v1659 = vadd.f32 0.0, %v1658
        %v1660 = vpop.f32.mrf.mxu0
        %1661 = vdwg.mxu0
        %v1662 = vadd.f32 %v1572, %v1656
        %v1663 = vadd.f32 %v1575, %v1659
        %v1664 = vld [vmem:[#allocation2 + $0x8] sm:$0x3]
        %s1665 = scalar_lea.vmem [#allocation4], 416
        %v1666 = vld [vmem:[%s1665] sm:$0xf]
        %v1667 = vld [vmem:[%s1665 + $0x4] sm:$0xf]
        %v1668 = vld [vmem:[%s1665 + $0x8] sm:$0xf]
        %v1669 = vld [vmem:[%s1665 + $0xc] sm:$0xf]
        %v1670 = vld [vmem:[%s1665 + $0x10] sm:$0xf]
        %v1671 = vld [vmem:[%s1665 + $0x14] sm:$0xf]
        %v1672 = vld [vmem:[%s1665 + $0x18] sm:$0xf]
        %v1673 = vld [vmem:[%s1665 + $0x1c] sm:$0xf]
        %v1675 = vunpack.c.l.b16 %v1664
        %v1676 = vpack.c.b16 %v1675, %v1675
        %v1678 = vshrl.u32 %v1590, 16
        %v1680 = vrot.slane %v1678, 1
        %v1681 = vshll.u32 %v1590, 16
        %v1683 = vrot.slane %v1681, 2
        %v1684 = vor.u32 %v1680, %v1683
        %v1686 = vshrl.u32 %v1676, 16
        %v1688 = vrot.slane %v1686, 1
        %v1689 = vshll.u32 %v1676, 16
        %v1691 = vrot.slane %v1689, 2
        %v1692 = vor.u32 %v1688, %v1691
        %v1693 = vsel %vm611, %v1684, %v1692
        %v1702 = vunpack.c.l.b16 %v1666
        %v1703 = vunpack.c.l.b16 %v1667
        %v1704 = vunpack.c.l.b16 %v1668
        %v1705 = vunpack.c.l.b16 %v1669
        %v1706 = vunpack.c.l.b16 %v1670
        %v1707 = vunpack.c.l.b16 %v1671
        %v1708 = vunpack.c.l.b16 %v1672
        %v1709 = vunpack.c.l.b16 %v1673
        %v1710 = vpack.c.b16 %v1703, %v1702
        %v1711 = vpack.c.b16 %v1705, %v1704
        %v1712 = vpack.c.b16 %v1707, %v1706
        %v1713 = vpack.c.b16 %v1709, %v1708
        %v1719 = vsel %vm399, %v1693, 0
        %1721 = vmatprep.subr.bf16.mxu0 0
        %1722 = vmatpush1.bf16.msra.mxu0 0
        %1723 = vmatprep.subr.bf16.mxu0 0
        %1724 = vmatpush1.bf16.msra.mxu0 0
        %1725 = vmatprep.subr.bf16.mxu0 0
        %1726 = vmatpush1.bf16.msra.mxu0 0
        %1727 = vmatprep.subr.bf16.mxu0 0
        %1728 = vmatpush1.bf16.msra.mxu0 0
        %1729 = vmatprep.subr.bf16.mxu0 0
        %1730 = vmatpush1.bf16.msra.mxu0 %v1713
        %1731 = vmatprep.subr.bf16.mxu0 0
        %1732 = vmatpush1.bf16.msra.mxu0 %v1712
        %1733 = vmatprep.subr.bf16.mxu0 0
        %1734 = vmatpush1.bf16.msra.mxu0 %v1711
        %1735 = vmatprep.subr.bf16.mxu0 0
        %1736 = vmatpush1.bf16.msra.mxu0 %v1710
        %1737 = vmatprep.subr.bf16.mxu0 0
        %1738 = vmatpush2.bf16.msra.mxu0 0
        %1739 = vmatprep.subr.bf16.mxu0 0
        %1740 = vmatpush2.bf16.msra.mxu0 0
        %1741 = vmatprep.subr.bf16.mxu0 0
        %1742 = vmatpush2.bf16.msra.mxu0 0
        %1743 = vmatprep.subr.bf16.mxu0 0
        %1744 = vmatpush2.bf16.msra.mxu0 0
        %1745 = vmatprep.subr.bf16.mxu0 0
        %1746 = vmatpush2.bf16.msra.mxu0 0
        %1747 = vmatprep.subr.bf16.mxu0 0
        %1748 = vmatpush2.bf16.msra.mxu0 0
        %1749 = vmatprep.subr.bf16.mxu0 0
        %1750 = vmatpush2.bf16.msra.mxu0 0
        %1751 = vmatprep.subr.bf16.mxu0 0
        %1752 = vmatpush2.bf16.msra.mxu0 0
        %1753 = vmatprep.mubr.bf16.mxu0 0
        %1754 = vmatmul.mubr.bf16.gmra.mxu0 %v1719
        %v1755 = vpop.f32.mrf.mxu0
        %v1756 = vadd.f32 0.0, %v1755
        %v1757 = vpop.f32.mrf.mxu0
        %v1758 = vpop.f32.mrf.mxu0
        %v1759 = vadd.f32 0.0, %v1758
        %v1760 = vpop.f32.mrf.mxu0
        %1761 = vdwg.mxu0
        %v1762 = vadd.f32 %v1662, %v1756
        %v1763 = vadd.f32 %v1663, %v1759
        %v1764 = vld [vmem:[#allocation2] sm:$0xc]
        %s1765 = scalar_lea.vmem [#allocation4], 448
        %v1766 = vld [vmem:[%s1765] sm:$0xf]
        %v1767 = vld [vmem:[%s1765 + $0x4] sm:$0xf]
        %v1768 = vld [vmem:[%s1765 + $0x8] sm:$0xf]
        %v1769 = vld [vmem:[%s1765 + $0xc] sm:$0xf]
        %v1770 = vld [vmem:[%s1765 + $0x10] sm:$0xf]
        %v1771 = vld [vmem:[%s1765 + $0x14] sm:$0xf]
        %v1772 = vld [vmem:[%s1765 + $0x18] sm:$0xf]
        %v1773 = vld [vmem:[%s1765 + $0x1c] sm:$0xf]
        %v1775 = vunpack.c.l.b16 %v1764
        %v1776 = vpack.c.b16 %v1427, %v1775
        %v1777 = vrot.slane %v1776, 2
        %v1778 = vrot.slane %v1676, 2
        %v1779 = vsel %vm712, %v1777, %v1778
        %v1788 = vunpack.c.l.b16 %v1766
        %v1789 = vunpack.c.l.b16 %v1767
        %v1790 = vunpack.c.l.b16 %v1768
        %v1791 = vunpack.c.l.b16 %v1769
        %v1792 = vunpack.c.l.b16 %v1770
        %v1793 = vunpack.c.l.b16 %v1771
        %v1794 = vunpack.c.l.b16 %v1772
        %v1795 = vunpack.c.l.b16 %v1773
        %v1796 = vpack.c.b16 %v1789, %v1788
        %v1797 = vpack.c.b16 %v1791, %v1790
        %v1798 = vpack.c.b16 %v1793, %v1792
        %v1799 = vpack.c.b16 %v1795, %v1794
        %v1805 = vsel %vm399, %v1779, 0
        %1807 = vmatprep.subr.bf16.mxu0 0
        %1808 = vmatpush1.bf16.msra.mxu0 0
        %1809 = vmatprep.subr.bf16.mxu0 0
        %1810 = vmatpush1.bf16.msra.mxu0 0
        %1811 = vmatprep.subr.bf16.mxu0 0
        %1812 = vmatpush1.bf16.msra.mxu0 0
        %1813 = vmatprep.subr.bf16.mxu0 0
        %1814 = vmatpush1.bf16.msra.mxu0 0
        %1815 = vmatprep.subr.bf16.mxu0 0
        %1816 = vmatpush1.bf16.msra.mxu0 %v1799
        %1817 = vmatprep.subr.bf16.mxu0 0
        %1818 = vmatpush1.bf16.msra.mxu0 %v1798
        %1819 = vmatprep.subr.bf16.mxu0 0
        %1820 = vmatpush1.bf16.msra.mxu0 %v1797
        %1821 = vmatprep.subr.bf16.mxu0 0
        %1822 = vmatpush1.bf16.msra.mxu0 %v1796
        %1823 = vmatprep.subr.bf16.mxu0 0
        %1824 = vmatpush2.bf16.msra.mxu0 0
        %1825 = vmatprep.subr.bf16.mxu0 0
        %1826 = vmatpush2.bf16.msra.mxu0 0
        %1827 = vmatprep.subr.bf16.mxu0 0
        %1828 = vmatpush2.bf16.msra.mxu0 0
        %1829 = vmatprep.subr.bf16.mxu0 0
        %1830 = vmatpush2.bf16.msra.mxu0 0
        %1831 = vmatprep.subr.bf16.mxu0 0
        %1832 = vmatpush2.bf16.msra.mxu0 0
        %1833 = vmatprep.subr.bf16.mxu0 0
        %1834 = vmatpush2.bf16.msra.mxu0 0
        %1835 = vmatprep.subr.bf16.mxu0 0
        %1836 = vmatpush2.bf16.msra.mxu0 0
        %1837 = vmatprep.subr.bf16.mxu0 0
        %1838 = vmatpush2.bf16.msra.mxu0 0
        %1839 = vmatprep.mubr.bf16.mxu0 0
        %1840 = vmatmul.mubr.bf16.gmra.mxu0 %v1805
        %v1841 = vpop.f32.mrf.mxu0
        %v1842 = vadd.f32 0.0, %v1841
        %v1843 = vpop.f32.mrf.mxu0
        %v1844 = vpop.f32.mrf.mxu0
        %v1845 = vadd.f32 0.0, %v1844
        %v1846 = vpop.f32.mrf.mxu0
        %1847 = vdwg.mxu0
        %v1848 = vadd.f32 %v1762, %v1842
        %v1849 = vadd.f32 %v1763, %v1845
        %s1850 = scalar_lea.vmem %s2, 2
        %v1851 = vld [vmem:[%s1850] sm:$0x1]
        %v1853 = vlaneseq
        %v1854 = vshrl.u32 %v1853, 7
        %v1855 = vsub.s32 0, %v1854
        %v1856 = vrot.slane %v1851, %v1855
        %v1858 = vadd.f32 %v1848, %v1856
        %v1859 = vadd.f32 %v1849, %v1856
        %v1860 = vsel %vm399, %v1858, 0.0
        %1861 = vadd.xlane.f32.xlu0 %v1860
        %v1862 = vpop.xlane.xlu0 %1861
        %v1863 = vsel %vm399, %v1859, 0.0
        %1864 = vadd.xlane.f32.xlu0 %v1863
        %v1865 = vpop.xlane.xlu0 %1864
        %v1866 = vmul.f32 %v1862, %v801
        %v1867 = vmul.f32 %v1865, %v801
        %v1868 = vmul.f32 %v1858, %v1858
        %v1869 = vmul.f32 %v1859, %v1859
        %v1870 = vsel %vm399, %v1868, 0.0
        %1871 = vadd.xlane.f32.xlu0 %v1870
        %v1872 = vpop.xlane.xlu0 %1871
        %v1873 = vsel %vm399, %v1869, 0.0
        %1874 = vadd.xlane.f32.xlu0 %v1873
        %v1875 = vpop.xlane.xlu0 %1874
        %v1876 = vmul.f32 %v1872, %v801
        %v1877 = vmul.f32 %v1875, %v801
        %v1878 = vmul.f32 %v1866, %v1866
        %v1879 = vmul.f32 %v1867, %v1867
        %v1880 = vsub.f32 %v1876, %v1878
        %v1881 = vsub.f32 %v1877, %v1879
        %v1882 = vsub.f32 %v1858, %v1866
        %v1883 = vsub.f32 %v1859, %v1867
        %v1884 = vadd.f32 %v1880, 1e-05
        %v1885 = vadd.f32 %v1881, 1e-05
        %v1886 = vrsqrt.pop %v1884
        %v1887 = vrsqrt.pop %v1885
        %v1888 = vmul.f32 %v1882, %v1886
        %v1889 = vmul.f32 %v1883, %v1887
        %s1890 = scalar_lea.vmem %s3, 2
        %v1891 = vld [vmem:[%s1890] sm:$0x1]
        %v1893 = vlaneseq
        %v1894 = vshrl.u32 %v1893, 7
        %v1895 = vsub.s32 0, %v1894
        %v1896 = vrot.slane %v1891, %v1895
        %v1898 = vmul.f32 %v1888, %v1896
        %v1899 = vmul.f32 %v1889, %v1896
        %s1900 = scalar_lea.vmem %s4, 2
        %v1901 = vld [vmem:[%s1900] sm:$0x1]
        %v1903 = vlaneseq
        %v1904 = vshrl.u32 %v1903, 7
        %v1905 = vsub.s32 0, %v1904
        %v1906 = vrot.slane %v1901, %v1905
        %v1908 = vadd.f32 %v1898, %v1906
        %v1909 = vadd.f32 %v1899, %v1906
        %vm1910 = vcmp.ge.f32.partialorder %v1908, 0.0
        %vm1911 = vcmp.ge.f32.partialorder %v1909, 0.0
        %v1912 = vmul.f32 %v1908, 0.2
        %v1913 = vmul.f32 %v1909, 0.2
        %v1914 = vsel %vm1910, %v1908, %v1912
        %v1915 = vsel %vm1911, %v1909, %v1913
        %v1916 = vmul.f32 %v1914, %v303
        %v1917 = vmul.f32 %v1915, %v308
        %v1918 = vpack.c.bf16 %v1917, %v1916
        %v1920 = vunpack.c.l.b16 %v1918
        %v1921 = vunpack.c.h.b16 %v1918
        %v1922 = vpack.c.b16 %v1920, %v1920
        %v1923 = vpack.c.b16 %v1921, %v1921
        %1926 = vst.msk [vmem:[%s274] sm:$0xf] %vm286, %v1922
        %1927 = vst.msk [vmem:[%s274 + $0x4] sm:$0xf] %vm286, %v1923
        %s1928 = sand.u32 %s165, 1
        %s1929 = scalar_lea.sflag [#allocation6], %s1928
        %s1930 = sand.u32 %s165, 1
        %s1931 = smul.addr %s1930, 8
        %s1932 = scalar_lea.vmem [#allocation7], %s1931
        // Predicated region
        $region49: #{tpu_custom_call.1} parent=43 // pred_check
          %p1933 = pneg %p175
        $region50: #{tpu_custom_call.1} parent=43 // pred_check_branch
          %1935 = sbr.rel (%p1933) target = $region52
        $region51: #{tpu_custom_call.1} parent=43 // pred_region
          %s1937 = ssub.s32 128, 128
          %1938 = vsyncadd %s1929, %s1937
          %s1939 = smul.addr %s21, 2
          %s1940 = smul.addr %s1939, 64
          %s1941 = scalar_lea.hbm %s6, %s1940
          %s1942 = sshll.u32 %s1932, 4
          %s1943 = int_to_ptr.vmem [resolvable:$true] %s1942
          %1948 = dma.vmem_to_hbm [thread:$0]  %s1943, 128, %s1941, %s1929, 64, 64, 4
        $region52: #{tpu_custom_call.1} parent=43 // pred_fallthru
          _
      $region44: #{tpu_custom_call.1} parent=5 // pred_fallthru
        _
      %p1949 = scmp.le.s32.totalorder 2, %s16
      // Predicated region
      $region53: #{tpu_custom_call.1} parent=5 // pred_check
        %p1950 = pneg %p1949
      $region54: #{tpu_custom_call.1} parent=5 // pred_check_branch
        %1952 = sbr.rel (%p1950) target = $region56
      $region55: #{tpu_custom_call.1} parent=5 // pred_region
        %s1953 = ssub.s32 %s16, 2
        // Predicated region
        $region57: #{tpu_custom_call.1} parent=55 // pred_check
          %p1954 = pneg %p181
        $region58: #{tpu_custom_call.1} parent=55 // pred_check_branch
          %1956 = sbr.rel (%p1954) target = $region60
        $region59: #{tpu_custom_call.1} parent=55 // pred_region
          %s1957 = sand.u32 %s166, 1
          %s1958 = scalar_lea.sflag [#allocation6], %s1957
          %s1959 = sand.u32 %s166, 1
          %s1960 = smul.addr %s1959, 8
          %s1961 = scalar_lea.vmem [#allocation7], %s1960
          %1962 = dma.done %s1958, 128
        $region60: #{tpu_custom_call.1} parent=55 // pred_fallthru
          _
      $region56: #{tpu_custom_call.1} parent=5 // pred_fallthru
        _
    $region6: #{tpu_custom_call.1} parent=1 // loop_footer
      %s20 = sadd.s32 1, %s16
    $region7: #{tpu_custom_call.1} parent=1 // loop_footer_branch
      %15 = sbr.rel target = $region3
    $region8: #{tpu_custom_call.1} parent=1 // loop_exit
      _
    %1963 = vsyncpa [#allocation5], 1
    %s1964 = scalar_lea.sflag [#allocation5], 1
    %1965 = vsyncpa %s1964, 1
    %1966 = vsyncpa [#allocation6], 1
    %s1967 = scalar_lea.sflag [#allocation6], 1
    %1968 = vsyncpa %s1967, 1

</llo_original>
